<compile_context>
chip_gen: v6e
topology: v6e:2x2x1
jax: 0.10.0
libtpu: 0.0.40
codegen_flags: <defaults>
</compile_context>

<pallas_src>
import functools
import math

import jax
import jax.numpy as jnp
from jax.experimental import pallas as pl
from jax.experimental.pallas import tpu as pltpu


# ----------------------------------------------------------------------------
# Glue: degree-based normalization scales (DGL GraphConv norm='both',
# allow_zero_in_degree=True -> degrees clamped to >= 1).  A[i, j] != 0 means an
# edge j -> i (message from source j to destination i).
# ----------------------------------------------------------------------------
def _degree_scales(adj):
    deg_in = jnp.maximum(jnp.sum(adj, axis=1), 1.0)    # in-degree of dst i
    deg_out = jnp.maximum(jnp.sum(adj, axis=0), 1.0)   # out-degree of src j
    din = (deg_in ** -0.5).reshape(-1, 1).astype(jnp.float32)
    dout = (deg_out ** -0.5).reshape(-1, 1).astype(jnp.float32)
    return din, dout


# ----------------------------------------------------------------------------
# Path 1: whole-forward fused kernel (small/medium GraphSAINT subgraphs).
# ----------------------------------------------------------------------------
def _gcn_fused_kernel(a_ref, din_ref, dout_ref, x_ref,
                      w0_ref, b0_ref, w1_ref, b1_ref,
                      w2_ref, b2_ref, w3_ref, b3_ref,
                      o_ref, *, mxu_dtype):
    a = a_ref[...]                     # (N, N) mxu_dtype adjacency (0/1 -> exact)
    din = din_ref[...]                 # (N, 1) f32  D_in^{-1/2}
    dout = dout_ref[...]               # (N, 1) f32  D_out^{-1/2}
    h = x_ref[...].astype(jnp.float32)

    layers = ((w0_ref, b0_ref, True),
              (w1_ref, b1_ref, True),
              (w2_ref, b2_ref, True),
              (w3_ref, b3_ref, False))
    for w_ref, b_ref, relu in layers:
        # Feature transform once per layer (tiny matmul), then aggregate at
        # Fout width.  bf16 MXU operands, f32 accumulation.
        hw = jnp.dot(h.astype(mxu_dtype), w_ref[...],
                     preferred_element_type=jnp.float32)
        hw = (hw * dout).astype(mxu_dtype)            # fold D_out^{-1/2} into HW
        agg = jnp.dot(a, hw, preferred_element_type=jnp.float32)
        h = agg * din + b_ref[...]                    # D_in^{-1/2}, bias
        if relu:
            h = jnp.maximum(h, 0.0)
        # TODO(synk): nn.Dropout(0.5) training-mode stochastic mask not
        # implemented; this is the eval-mode (identity) forward pass.
    o_ref[...] = h.astype(o_ref.dtype)


def gcn_forward_fused(adj, x, params, *, mxu_dtype=jnp.bfloat16):
    """All four GraphConv layers in ONE pallas_call; hidden activations never
    leave VMEM (single launch, adjacency read from HBM exactly once)."""
    assert len(params) == 4
    n = adj.shape[0]
    fout = params[-1][0].shape[1]
    din, dout = _degree_scales(adj)
    a_mxu = adj.astype(mxu_dtype)      # one cast, reused by all 4 layers (0/1 exact)

    args = [a_mxu, din, dout, x]
    for w, b in params:
        args.append(w.astype(mxu_dtype))
        args.append(b.reshape(1, -1).astype(jnp.float32))

    in_specs = [pl.BlockSpec(a.shape, lambda i: (0, 0)) for a in args]
    return pl.pallas_call(
        functools.partial(_gcn_fused_kernel, mxu_dtype=mxu_dtype),
        out_shape=jax.ShapeDtypeStruct((n, fout), jnp.float32),
        grid_spec=pltpu.PrefetchScalarGridSpec(
            num_scalar_prefetch=0,
            grid=(1,),
            in_specs=in_specs,
            out_specs=pl.BlockSpec((n, fout), lambda i: (0, 0)),
        ),
        compiler_params=pltpu.CompilerParams(
            dimension_semantics=("arbitrary",),
            vmem_limit_bytes=32 * 1024 * 1024),   # covers v5e's 16 MiB default
    )(*args)


# ----------------------------------------------------------------------------
# Path 2: layer-wise M x K tiled aggregation (subgraphs too large for VMEM).
# Kernel computes only A_block @ (D_out^{-1/2} H W); bias/relu/D_in^{-1/2} on
# the accumulator finalize step.
# ----------------------------------------------------------------------------
def _gcn_agg_kernel(a_ref, hw_ref, din_ref, b_ref, o_ref, acc_ref, *, apply_relu):
    # grid = (row blocks ['parallel'], K blocks ['arbitrary' reduction, last])
    k = pl.program_id(1)

    @pl.when(k == 0)
    def _():
        acc_ref[...] = jnp.zeros_like(acc_ref)

    acc_ref[...] += jnp.dot(a_ref[...], hw_ref[...],
                            preferred_element_type=jnp.float32)

    @pl.when(k == pl.num_programs(1) - 1)
    def _():
        out = acc_ref[...] * din_ref[...] + b_ref[...]   # D_in^{-1/2}, bias
        if apply_relu:
            out = jnp.maximum(out, 0.0)
        o_ref[...] = out.astype(o_ref.dtype)


def _gcn_agg_layer(a_mxu, hw_scaled, din, b2d, *, apply_relu, tm, tk):
    n = a_mxu.shape[0]
    fout = hw_scaled.shape[1]
    grid = (n // tm, n // tk)
    return pl.pallas_call(
        functools.partial(_gcn_agg_kernel, apply_relu=apply_relu),
        out_shape=jax.ShapeDtypeStruct((n, fout), jnp.float32),
        grid_spec=pltpu.PrefetchScalarGridSpec(
            num_scalar_prefetch=0,
            grid=grid,
            in_specs=[
                pl.BlockSpec((tm, tk), lambda i, k: (i, k)),     # A row/K block (bf16)
                pl.BlockSpec((tk, fout), lambda i, k: (k, 0)),   # dout-scaled H@W panel
                pl.BlockSpec((tm, 1), lambda i, k: (i, 0)),      # D_in^{-1/2} rows
                pl.BlockSpec((1, fout), lambda i, k: (0, 0)),    # bias
            ],
            out_specs=pl.BlockSpec((tm, fout), lambda i, k: (i, 0)),
            scratch_shapes=[pltpu.VMEM((tm, fout), jnp.float32)],
        ),
        compiler_params=pltpu.CompilerParams(
            dimension_semantics=("parallel", "arbitrary")),
    )(a_mxu, hw_scaled, din, b2d)


def gcn_forward_tiled(adj, x, params, *, tm=256, tk=512, mxu_dtype=jnp.bfloat16):
    """Layer-wise tiled path.  Default tm=256/tk=512 (bf16 A block) stays well
    inside 64 MiB VMEM (v7x) while filling the MXU.  Ragged N is zero-padded
    to a tile multiple; padded rows/cols cannot affect real rows (zero
    adjacency columns) and are sliced off at the end."""
    n = adj.shape[0]
    mult = math.lcm(tm, tk)
    n_pad = ((n + mult - 1) // mult) * mult
    if n_pad != n:
        pad = n_pad - n
        adj = jnp.pad(adj, ((0, pad), (0, pad)))
        x = jnp.pad(x, ((0, pad), (0, 0)))

    din, dout = _degree_scales(adj)
    a_mxu = adj.astype(mxu_dtype)      # cast once, reused by all 4 layers (0/1 exact)
    h = x
    n_layers = len(params)
    for l, (w, b) in enumerate(params):
        hw = jnp.dot(h, w, preferred_element_type=jnp.float32)   # tiny [N,Fin]x[Fin,Fout]
        hw_scaled = (hw * dout).astype(mxu_dtype)                # fold D_out^{-1/2}
        h = _gcn_agg_layer(a_mxu, hw_scaled, din,
                           b.reshape(1, -1).astype(jnp.float32),
                           apply_relu=(l != n_layers - 1), tm=tm, tk=tk)
        # TODO(synk): training-mode dropout not implemented (eval forward only).
    return h[:n] if n_pad != n else h


def gcn_forward(adj, x, params, *, mxu_dtype=jnp.bfloat16, tm=256, tk=512):
    """Dispatch: fully-fused kernel when the adjacency comfortably fits in VMEM
    (keeps all hidden activations on-chip and reads A once), else tiled path."""
    n = adj.shape[0]
    adj_bytes = n * n * jnp.dtype(mxu_dtype).itemsize
    if adj_bytes <= 8 * 1024 * 1024:              # <= 8 MiB resident adjacency
        return gcn_forward_fused(adj, x, params, mxu_dtype=mxu_dtype)
    return gcn_forward_tiled(adj, x, params, tm=tm, tk=tk, mxu_dtype=mxu_dtype)


# ----------------------------------------------------------------------------
# Pure-JAX reference of the original module's forward (eval mode), for checking.
# ----------------------------------------------------------------------------
def gcn_reference(adj, x, params):
    din, dout = _degree_scales(adj)
    a_hat = din * adj * dout.reshape(1, -1)
    h = x
    for l, (w, b) in enumerate(params):
        h = a_hat @ (h @ w) + b
        if l != len(params) - 1:
            h = jnp.maximum(h, 0.0)
    return h


def init_params(key, in_size, hid_size, out_size):
    sizes = [(in_size, hid_size), (hid_size, hid_size),
             (hid_size, hid_size), (hid_size, out_size)]
    params = []
    for fi, fo in sizes:
        key, wk = jax.random.split(key)
        limit = (6.0 / (fi + fo)) ** 0.5           # xavier_uniform (DGL default)
        w = jax.random.uniform(wk, (fi, fo), jnp.float32, -limit, limit)
        b = jnp.zeros((fo,), jnp.float32)
        params.append((w, b))
    return params


if __name__ == "__main__":
    key = jax.random.PRNGKey(0)
    k_adj1, k_x1, k_adj2, k_x2, k_adj3, k_x3, k_p = jax.random.split(key, 7)

    IN, HID, OUT = 32, 32, 16
    params = init_params(k_p, IN, HID, OUT)

    # 1) Small GraphSAINT subgraph -> fully fused single-kernel path.
    N1 = 128
    adj1 = jax.random.bernoulli(k_adj1, 0.1, (N1, N1)).astype(jnp.float32)
    x1 = jax.random.normal(k_x1, (N1, IN), jnp.float32)
    out1 = jax.jit(gcn_forward)(adj1, x1, params)
    jax.block_until_ready(out1)
    assert out1.shape == (N1, OUT) and out1.dtype == jnp.float32
    assert jnp.allclose(out1, gcn_reference(adj1, x1, params), rtol=1e-1, atol=1e-1)

    # 2) Larger subgraph -> tiled M x K accumulator path (2x2 grid here).
    N2 = 256
    adj2 = jax.random.bernoulli(k_adj2, 0.05, (N2, N2)).astype(jnp.float32)
    x2 = jax.random.normal(k_x2, (N2, IN), jnp.float32)
    tiled_fwd = jax.jit(functools.partial(gcn_forward_tiled, tm=128, tk=128))
    out2 = tiled_fwd(adj2, x2, params)
    jax.block_until_ready(out2)
    assert out2.shape == (N2, OUT) and out2.dtype == jnp.float32
    assert jnp.allclose(out2, gcn_reference(adj2, x2, params), rtol=1e-1, atol=1e-1)

    # 3) Ragged N (not a tile multiple) -> tiled path with zero padding.
    N3 = 200
    adj3 = jax.random.bernoulli(k_adj3, 0.05, (N3, N3)).astype(jnp.float32)
    x3 = jax.random.normal(k_x3, (N3, IN), jnp.float32)
    out3 = tiled_fwd(adj3, x3, params)
    jax.block_until_ready(out3)
    assert out3.shape == (N3, OUT) and out3.dtype == jnp.float32
    assert jnp.allclose(out3, gcn_reference(adj3, x3, params), rtol=1e-1, atol=1e-1)

    print("KERNEL_OK")
</pallas_src>

<mosaic_0001>
module attributes {stable_mosaic.version = 11 : i64} {
  func.func @_gcn_fused_kernel(%arg0: i32, %arg1: memref<128x128xbf16, #tpu.memory_space<vmem>>, %arg2: memref<128x1xf32, #tpu.memory_space<vmem>>, %arg3: memref<128x1xf32, #tpu.memory_space<vmem>>, %arg4: memref<128x32xf32, #tpu.memory_space<vmem>>, %arg5: memref<32x32xbf16, #tpu.memory_space<vmem>>, %arg6: memref<1x32xf32, #tpu.memory_space<vmem>>, %arg7: memref<32x32xbf16, #tpu.memory_space<vmem>>, %arg8: memref<1x32xf32, #tpu.memory_space<vmem>>, %arg9: memref<32x32xbf16, #tpu.memory_space<vmem>>, %arg10: memref<1x32xf32, #tpu.memory_space<vmem>>, %arg11: memref<32x16xbf16, #tpu.memory_space<vmem>>, %arg12: memref<1x16xf32, #tpu.memory_space<vmem>>, %arg13: memref<128x16xf32, #tpu.memory_space<vmem>>) attributes {dimension_semantics = [#tpu.dimension_semantics<arbitrary>], iteration_bounds = array<i64: 1>, scalar_prefetch = 0 : i64, scratch_operands = 0 : i64, tpu.core_type = #tpu.core_type<tc>, window_params = [{pipeline_mode = #tpu.pipeline_mode<synchronous>, transform_indices = @transform_0, window_bounds = array<i64: 128, 128>}, {pipeline_mode = #tpu.pipeline_mode<synchronous>, transform_indices = @transform_1, window_bounds = array<i64: 128, 1>}, {pipeline_mode = #tpu.pipeline_mode<synchronous>, transform_indices = @transform_2, window_bounds = array<i64: 128, 1>}, {pipeline_mode = #tpu.pipeline_mode<synchronous>, transform_indices = @transform_3, window_bounds = array<i64: 128, 32>}, {pipeline_mode = #tpu.pipeline_mode<synchronous>, transform_indices = @transform_4, window_bounds = array<i64: 32, 32>}, {pipeline_mode = #tpu.pipeline_mode<synchronous>, transform_indices = @transform_5, window_bounds = array<i64: 1, 32>}, {pipeline_mode = #tpu.pipeline_mode<synchronous>, transform_indices = @transform_6, window_bounds = array<i64: 32, 32>}, {pipeline_mode = #tpu.pipeline_mode<synchronous>, transform_indices = @transform_7, window_bounds = array<i64: 1, 32>}, {pipeline_mode = #tpu.pipeline_mode<synchronous>, transform_indices = @transform_8, window_bounds = array<i64: 32, 32>}, {pipeline_mode = #tpu.pipeline_mode<synchronous>, transform_indices = @transform_9, window_bounds = array<i64: 1, 32>}, {pipeline_mode = #tpu.pipeline_mode<synchronous>, transform_indices = @transform_10, window_bounds = array<i64: 32, 16>}, {pipeline_mode = #tpu.pipeline_mode<synchronous>, transform_indices = @transform_11, window_bounds = array<i64: 1, 16>}, {pipeline_mode = #tpu.pipeline_mode<synchronous>, transform_indices = @transform_12, window_bounds = array<i64: 128, 16>}]} {
    %c0 = arith.constant 0 : index
    %c0_0 = arith.constant 0 : index
    %0 = vector.load %arg1[%c0, %c0_0] : memref<128x128xbf16, #tpu.memory_space<vmem>>, vector<128x128xbf16>
    %c0_1 = arith.constant 0 : index
    %c0_2 = arith.constant 0 : index
    %1 = vector.load %arg2[%c0_1, %c0_2] : memref<128x1xf32, #tpu.memory_space<vmem>>, vector<128x1xf32>
    %c0_3 = arith.constant 0 : index
    %c0_4 = arith.constant 0 : index
    %2 = vector.load %arg3[%c0_3, %c0_4] : memref<128x1xf32, #tpu.memory_space<vmem>>, vector<128x1xf32>
    %c0_5 = arith.constant 0 : index
    %c0_6 = arith.constant 0 : index
    %3 = vector.load %arg4[%c0_5, %c0_6] : memref<128x32xf32, #tpu.memory_space<vmem>>, vector<128x32xf32>
    %4 = arith.truncf %3 : vector<128x32xf32> to vector<128x32xbf16>
    %c0_7 = arith.constant 0 : index
    %c0_8 = arith.constant 0 : index
    %5 = vector.load %arg5[%c0_7, %c0_8] : memref<32x32xbf16, #tpu.memory_space<vmem>>, vector<32x32xbf16>
    %cst = arith.constant dense<0.000000e+00> : vector<128x32xf32>
    %6 = tpu.matmul %4, %5, %cst {dimension_numbers = #tpu.dot_dimension_numbers<[1], [0], [0], [1], [0, 0, 1, 1], [], []>} : vector<128x32xbf16>, vector<32x32xbf16>, vector<128x32xf32> -> vector<128x32xf32>
    %7 = vector.broadcast %2 : vector<128x1xf32> to vector<128x32xf32>
    %8 = arith.mulf %6, %7 : vector<128x32xf32>
    %9 = arith.truncf %8 : vector<128x32xf32> to vector<128x32xbf16>
    %cst_9 = arith.constant dense<0.000000e+00> : vector<128x32xf32>
    %10 = tpu.matmul %0, %9, %cst_9 {dimension_numbers = #tpu.dot_dimension_numbers<[1], [0], [0], [1], [0, 0, 1, 1], [], []>} : vector<128x128xbf16>, vector<128x32xbf16>, vector<128x32xf32> -> vector<128x32xf32>
    %11 = vector.broadcast %1 : vector<128x1xf32> to vector<128x32xf32>
    %12 = arith.mulf %10, %11 : vector<128x32xf32>
    %c0_10 = arith.constant 0 : index
    %c0_11 = arith.constant 0 : index
    %13 = vector.load %arg6[%c0_10, %c0_11] : memref<1x32xf32, #tpu.memory_space<vmem>>, vector<1x32xf32>
    %14 = vector.broadcast %13 : vector<1x32xf32> to vector<128x32xf32>
    %15 = arith.addf %12, %14 : vector<128x32xf32>
    %cst_12 = arith.constant 0.000000e+00 : f32
    %16 = vector.broadcast %cst_12 : f32 to vector<128x32xf32>
    %17 = arith.maximumf %15, %16 : vector<128x32xf32>
    %18 = arith.truncf %17 : vector<128x32xf32> to vector<128x32xbf16>
    %c0_13 = arith.constant 0 : index
    %c0_14 = arith.constant 0 : index
    %19 = vector.load %arg7[%c0_13, %c0_14] : memref<32x32xbf16, #tpu.memory_space<vmem>>, vector<32x32xbf16>
    %cst_15 = arith.constant dense<0.000000e+00> : vector<128x32xf32>
    %20 = tpu.matmul %18, %19, %cst_15 {dimension_numbers = #tpu.dot_dimension_numbers<[1], [0], [0], [1], [0, 0, 1, 1], [], []>} : vector<128x32xbf16>, vector<32x32xbf16>, vector<128x32xf32> -> vector<128x32xf32>
    %21 = vector.broadcast %2 : vector<128x1xf32> to vector<128x32xf32>
    %22 = arith.mulf %20, %21 : vector<128x32xf32>
    %23 = arith.truncf %22 : vector<128x32xf32> to vector<128x32xbf16>
    %cst_16 = arith.constant dense<0.000000e+00> : vector<128x32xf32>
    %24 = tpu.matmul %0, %23, %cst_16 {dimension_numbers = #tpu.dot_dimension_numbers<[1], [0], [0], [1], [0, 0, 1, 1], [], []>} : vector<128x128xbf16>, vector<128x32xbf16>, vector<128x32xf32> -> vector<128x32xf32>
    %25 = vector.broadcast %1 : vector<128x1xf32> to vector<128x32xf32>
    %26 = arith.mulf %24, %25 : vector<128x32xf32>
    %c0_17 = arith.constant 0 : index
    %c0_18 = arith.constant 0 : index
    %27 = vector.load %arg8[%c0_17, %c0_18] : memref<1x32xf32, #tpu.memory_space<vmem>>, vector<1x32xf32>
    %28 = vector.broadcast %27 : vector<1x32xf32> to vector<128x32xf32>
    %29 = arith.addf %26, %28 : vector<128x32xf32>
    %cst_19 = arith.constant 0.000000e+00 : f32
    %30 = vector.broadcast %cst_19 : f32 to vector<128x32xf32>
    %31 = arith.maximumf %29, %30 : vector<128x32xf32>
    %32 = arith.truncf %31 : vector<128x32xf32> to vector<128x32xbf16>
    %c0_20 = arith.constant 0 : index
    %c0_21 = arith.constant 0 : index
    %33 = vector.load %arg9[%c0_20, %c0_21] : memref<32x32xbf16, #tpu.memory_space<vmem>>, vector<32x32xbf16>
    %cst_22 = arith.constant dense<0.000000e+00> : vector<128x32xf32>
    %34 = tpu.matmul %32, %33, %cst_22 {dimension_numbers = #tpu.dot_dimension_numbers<[1], [0], [0], [1], [0, 0, 1, 1], [], []>} : vector<128x32xbf16>, vector<32x32xbf16>, vector<128x32xf32> -> vector<128x32xf32>
    %35 = vector.broadcast %2 : vector<128x1xf32> to vector<128x32xf32>
    %36 = arith.mulf %34, %35 : vector<128x32xf32>
    %37 = arith.truncf %36 : vector<128x32xf32> to vector<128x32xbf16>
    %cst_23 = arith.constant dense<0.000000e+00> : vector<128x32xf32>
    %38 = tpu.matmul %0, %37, %cst_23 {dimension_numbers = #tpu.dot_dimension_numbers<[1], [0], [0], [1], [0, 0, 1, 1], [], []>} : vector<128x128xbf16>, vector<128x32xbf16>, vector<128x32xf32> -> vector<128x32xf32>
    %39 = vector.broadcast %1 : vector<128x1xf32> to vector<128x32xf32>
    %40 = arith.mulf %38, %39 : vector<128x32xf32>
    %c0_24 = arith.constant 0 : index
    %c0_25 = arith.constant 0 : index
    %41 = vector.load %arg10[%c0_24, %c0_25] : memref<1x32xf32, #tpu.memory_space<vmem>>, vector<1x32xf32>
    %42 = vector.broadcast %41 : vector<1x32xf32> to vector<128x32xf32>
    %43 = arith.addf %40, %42 : vector<128x32xf32>
    %cst_26 = arith.constant 0.000000e+00 : f32
    %44 = vector.broadcast %cst_26 : f32 to vector<128x32xf32>
    %45 = arith.maximumf %43, %44 : vector<128x32xf32>
    %46 = arith.truncf %45 : vector<128x32xf32> to vector<128x32xbf16>
    %c0_27 = arith.constant 0 : index
    %c0_28 = arith.constant 0 : index
    %47 = vector.load %arg11[%c0_27, %c0_28] : memref<32x16xbf16, #tpu.memory_space<vmem>>, vector<32x16xbf16>
    %cst_29 = arith.constant dense<0.000000e+00> : vector<128x16xf32>
    %48 = tpu.matmul %46, %47, %cst_29 {dimension_numbers = #tpu.dot_dimension_numbers<[1], [0], [0], [1], [0, 0, 1, 1], [], []>} : vector<128x32xbf16>, vector<32x16xbf16>, vector<128x16xf32> -> vector<128x16xf32>
    %49 = vector.broadcast %2 : vector<128x1xf32> to vector<128x16xf32>
    %50 = arith.mulf %48, %49 : vector<128x16xf32>
    %51 = arith.truncf %50 : vector<128x16xf32> to vector<128x16xbf16>
    %cst_30 = arith.constant dense<0.000000e+00> : vector<128x16xf32>
    %52 = tpu.matmul %0, %51, %cst_30 {dimension_numbers = #tpu.dot_dimension_numbers<[1], [0], [0], [1], [0, 0, 1, 1], [], []>} : vector<128x128xbf16>, vector<128x16xbf16>, vector<128x16xf32> -> vector<128x16xf32>
    %53 = vector.broadcast %1 : vector<128x1xf32> to vector<128x16xf32>
    %54 = arith.mulf %52, %53 : vector<128x16xf32>
    %c0_31 = arith.constant 0 : index
    %c0_32 = arith.constant 0 : index
    %55 = vector.load %arg12[%c0_31, %c0_32] : memref<1x16xf32, #tpu.memory_space<vmem>>, vector<1x16xf32>
    %56 = vector.broadcast %55 : vector<1x16xf32> to vector<128x16xf32>
    %57 = arith.addf %54, %56 : vector<128x16xf32>
    %c0_33 = arith.constant 0 : index
    %c0_34 = arith.constant 0 : index
    %58 = vector.load %arg13[%c0_33, %c0_34] : memref<128x16xf32, #tpu.memory_space<vmem>>, vector<128x16xf32>
    tpu.vector_store %arg13[%c0_33, %c0_34], %57 {strides = array<i32>} : memref<128x16xf32, #tpu.memory_space<vmem>>, vector<128x16xf32>,
    return
  }
  func.func @transform_0(%arg0: i32) -> (i32, i32) {
    %c0_i32 = arith.constant 0 : i32
    %c0_i32_0 = arith.constant 0 : i32
    %c0_i32_1 = arith.constant 0 : i32
    return %c0_i32, %c0_i32_0 : i32, i32
  }
  func.func @transform_1(%arg0: i32) -> (i32, i32) {
    %c0_i32 = arith.constant 0 : i32
    %c0_i32_0 = arith.constant 0 : i32
    %c0_i32_1 = arith.constant 0 : i32
    return %c0_i32, %c0_i32_0 : i32, i32
  }
  func.func @transform_2(%arg0: i32) -> (i32, i32) {
    %c0_i32 = arith.constant 0 : i32
    %c0_i32_0 = arith.constant 0 : i32
    %c0_i32_1 = arith.constant 0 : i32
    return %c0_i32, %c0_i32_0 : i32, i32
  }
  func.func @transform_3(%arg0: i32) -> (i32, i32) {
    %c0_i32 = arith.constant 0 : i32
    %c0_i32_0 = arith.constant 0 : i32
    %c0_i32_1 = arith.constant 0 : i32
    return %c0_i32, %c0_i32_0 : i32, i32
  }
  func.func @transform_4(%arg0: i32) -> (i32, i32) {
    %c0_i32 = arith.constant 0 : i32
    %c0_i32_0 = arith.constant 0 : i32
    %c0_i32_1 = arith.constant 0 : i32
    return %c0_i32, %c0_i32_0 : i32, i32
  }
  func.func @transform_5(%arg0: i32) -> (i32, i32) {
    %c0_i32 = arith.constant 0 : i32
    %c0_i32_0 = arith.constant 0 : i32
    %c0_i32_1 = arith.constant 0 : i32
    return %c0_i32, %c0_i32_0 : i32, i32
  }
  func.func @transform_6(%arg0: i32) -> (i32, i32) {
    %c0_i32 = arith.constant 0 : i32
    %c0_i32_0 = arith.constant 0 : i32
    %c0_i32_1 = arith.constant 0 : i32
    return %c0_i32, %c0_i32_0 : i32, i32
  }
  func.func @transform_7(%arg0: i32) -> (i32, i32) {
    %c0_i32 = arith.constant 0 : i32
    %c0_i32_0 = arith.constant 0 : i32
    %c0_i32_1 = arith.constant 0 : i32
    return %c0_i32, %c0_i32_0 : i32, i32
  }
  func.func @transform_8(%arg0: i32) -> (i32, i32) {
    %c0_i32 = arith.constant 0 : i32
    %c0_i32_0 = arith.constant 0 : i32
    %c0_i32_1 = arith.constant 0 : i32
    return %c0_i32, %c0_i32_0 : i32, i32
  }
  func.func @transform_9(%arg0: i32) -> (i32, i32) {
    %c0_i32 = arith.constant 0 : i32
    %c0_i32_0 = arith.constant 0 : i32
    %c0_i32_1 = arith.constant 0 : i32
    return %c0_i32, %c0_i32_0 : i32, i32
  }
  func.func @transform_10(%arg0: i32) -> (i32, i32) {
    %c0_i32 = arith.constant 0 : i32
    %c0_i32_0 = arith.constant 0 : i32
    %c0_i32_1 = arith.constant 0 : i32
    return %c0_i32, %c0_i32_0 : i32, i32
  }
  func.func @transform_11(%arg0: i32) -> (i32, i32) {
    %c0_i32 = arith.constant 0 : i32
    %c0_i32_0 = arith.constant 0 : i32
    %c0_i32_1 = arith.constant 0 : i32
    return %c0_i32, %c0_i32_0 : i32, i32
  }
  func.func @transform_12(%arg0: i32) -> (i32, i32) {
    %c0_i32 = arith.constant 0 : i32
    %c0_i32_0 = arith.constant 0 : i32
    %c0_i32_1 = arith.constant 0 : i32
    return %c0_i32, %c0_i32_0 : i32, i32
  }
}

</mosaic_0001>

<llo_original>
// kernel: gcn_forward.1
$region0: #{gcn_forward.1}
  #allocation0 [shape = 'u32[]', space=smem, size = 0x4, offset = 0x4, fixed_abs, tag = 'smem constant byte address 0x4 - core index']
  #allocation1 [shape = 'u32[144,128]{1,0:T(1,128)}', space=vmem, size = 0x12000, scoped, tag = 'internal scratch']
  %s0 = inlined_call_operand.vmem [shape: bf16[128,128], index: 0, kind: input, shape index: {}]
  %s1 = inlined_call_operand.vmem [shape: f32[128,1], index: 1, kind: input, shape index: {}]
  %s2 = inlined_call_operand.vmem [shape: f32[128,1], index: 2, kind: input, shape index: {}]
  %s3 = inlined_call_operand.vmem [shape: f32[128,32], index: 3, kind: input, shape index: {}]
  %s4 = inlined_call_operand.vmem [shape: bf16[32,32], index: 4, kind: input, shape index: {}]
  %s5 = inlined_call_operand.vmem [shape: f32[1,32], index: 5, kind: input, shape index: {}]
  %s6 = inlined_call_operand.vmem [shape: bf16[32,32], index: 6, kind: input, shape index: {}]
  %s7 = inlined_call_operand.vmem [shape: f32[1,32], index: 7, kind: input, shape index: {}]
  %s8 = inlined_call_operand.vmem [shape: bf16[32,32], index: 8, kind: input, shape index: {}]
  %s9 = inlined_call_operand.vmem [shape: f32[1,32], index: 9, kind: input, shape index: {}]
  %s10 = inlined_call_operand.vmem [shape: bf16[32,16], index: 10, kind: input, shape index: {}]
  %s11 = inlined_call_operand.vmem [shape: f32[1,16], index: 11, kind: input, shape index: {}]
  %s12 = inlined_call_operand.vmem [shape: f32[128,16], index: 12, kind: output, shape index: {}]
  %s13 = sld [smem:[#allocation0]]
  $region58: #{gcn_forward.1} parent=0
    _
  %s15 = ssub.s32 1, %s13
  %s16 = scalar_select 0, %s15, %s13
  // Predicated region
  $region2: #{gcn_forward.1} parent=0 // pred_check
    _
  $region3: #{gcn_forward.1} parent=0 // pred_check_branch
    %18 = sbr.rel (0) target = $region5
  $region4: #{gcn_forward.1} parent=0 // pred_region
    _
  $region5: #{gcn_forward.1} parent=0 // pred_fallthru
    _
  // Predicated region
  $region6: #{gcn_forward.1} parent=0 // pred_check
    _
  $region7: #{gcn_forward.1} parent=0 // pred_check_branch
    %20 = sbr.rel (0) target = $region9
  $region8: #{gcn_forward.1} parent=0 // pred_region
    _
  $region9: #{gcn_forward.1} parent=0 // pred_fallthru
    _
  // Predicated region
  $region10: #{gcn_forward.1} parent=0 // pred_check
    _
  $region11: #{gcn_forward.1} parent=0 // pred_check_branch
    %22 = sbr.rel (0) target = $region13
  $region12: #{gcn_forward.1} parent=0 // pred_region
    _
  $region13: #{gcn_forward.1} parent=0 // pred_fallthru
    _
  // Predicated region
  $region14: #{gcn_forward.1} parent=0 // pred_check
    _
  $region15: #{gcn_forward.1} parent=0 // pred_check_branch
    %24 = sbr.rel (0) target = $region17
  $region16: #{gcn_forward.1} parent=0 // pred_region
    _
  $region17: #{gcn_forward.1} parent=0 // pred_fallthru
    _
  // Predicated region
  $region18: #{gcn_forward.1} parent=0 // pred_check
    _
  $region19: #{gcn_forward.1} parent=0 // pred_check_branch
    %26 = sbr.rel (0) target = $region21
  $region20: #{gcn_forward.1} parent=0 // pred_region
    _
  $region21: #{gcn_forward.1} parent=0 // pred_fallthru
    _
  // Predicated region
  $region22: #{gcn_forward.1} parent=0 // pred_check
    _
  $region23: #{gcn_forward.1} parent=0 // pred_check_branch
    %28 = sbr.rel (0) target = $region25
  $region24: #{gcn_forward.1} parent=0 // pred_region
    _
  $region25: #{gcn_forward.1} parent=0 // pred_fallthru
    _
  // Predicated region
  $region26: #{gcn_forward.1} parent=0 // pred_check
    _
  $region27: #{gcn_forward.1} parent=0 // pred_check_branch
    %30 = sbr.rel (0) target = $region29
  $region28: #{gcn_forward.1} parent=0 // pred_region
    _
  $region29: #{gcn_forward.1} parent=0 // pred_fallthru
    _
  // Predicated region
  $region30: #{gcn_forward.1} parent=0 // pred_check
    _
  $region31: #{gcn_forward.1} parent=0 // pred_check_branch
    %32 = sbr.rel (0) target = $region33
  $region32: #{gcn_forward.1} parent=0 // pred_region
    _
  $region33: #{gcn_forward.1} parent=0 // pred_fallthru
    _
  // Predicated region
  $region34: #{gcn_forward.1} parent=0 // pred_check
    _
  $region35: #{gcn_forward.1} parent=0 // pred_check_branch
    %34 = sbr.rel (0) target = $region37
  $region36: #{gcn_forward.1} parent=0 // pred_region
    _
  $region37: #{gcn_forward.1} parent=0 // pred_fallthru
    _
  // Predicated region
  $region38: #{gcn_forward.1} parent=0 // pred_check
    _
  $region39: #{gcn_forward.1} parent=0 // pred_check_branch
    %36 = sbr.rel (0) target = $region41
  $region40: #{gcn_forward.1} parent=0 // pred_region
    _
  $region41: #{gcn_forward.1} parent=0 // pred_fallthru
    _
  // Predicated region
  $region42: #{gcn_forward.1} parent=0 // pred_check
    _
  $region43: #{gcn_forward.1} parent=0 // pred_check_branch
    %38 = sbr.rel (0) target = $region45
  $region44: #{gcn_forward.1} parent=0 // pred_region
    _
  $region45: #{gcn_forward.1} parent=0 // pred_fallthru
    _
  // Predicated region
  $region46: #{gcn_forward.1} parent=0 // pred_check
    _
  $region47: #{gcn_forward.1} parent=0 // pred_check_branch
    %40 = sbr.rel (0) target = $region49
  $region48: #{gcn_forward.1} parent=0 // pred_region
    _
  $region49: #{gcn_forward.1} parent=0 // pred_fallthru
    _
  %v42 = vld [vmem:[%s0] sm:$0xf]
  %v43 = vld [vmem:[%s0 + $0x4] sm:$0xf]
  %v44 = vld [vmem:[%s0 + $0x8] sm:$0xf]
  %v45 = vld [vmem:[%s0 + $0xc] sm:$0xf]
  %v46 = vld [vmem:[%s0 + $0x10] sm:$0xf]
  %v47 = vld [vmem:[%s0 + $0x14] sm:$0xf]
  %v48 = vld [vmem:[%s0 + $0x18] sm:$0xf]
  %v49 = vld [vmem:[%s0 + $0x1c] sm:$0xf]
  %v50 = vld [vmem:[%s0 + $0x20] sm:$0xf]
  %v51 = vld [vmem:[%s0 + $0x24] sm:$0xf]
  %v52 = vld [vmem:[%s0 + $0x28] sm:$0xf]
  %v53 = vld [vmem:[%s0 + $0x2c] sm:$0xf]
  %v54 = vld [vmem:[%s0 + $0x30] sm:$0xf]
  %v55 = vld [vmem:[%s0 + $0x34] sm:$0xf]
  %v56 = vld [vmem:[%s0 + $0x38] sm:$0xf]
  %v57 = vld [vmem:[%s0 + $0x3c] sm:$0xf]
  %v58 = vld [vmem:[%s1] sm:$0xff]
  %v59 = vld [vmem:[%s1 + $0x8] sm:$0xff]
  %v60 = vld [vmem:[%s1 + $0x10] sm:$0xff]
  %v61 = vld [vmem:[%s1 + $0x18] sm:$0xff]
  %v62 = vld [vmem:[%s1 + $0x20] sm:$0xff]
  %v63 = vld [vmem:[%s1 + $0x28] sm:$0xff]
  %v64 = vld [vmem:[%s1 + $0x30] sm:$0xff]
  %v65 = vld [vmem:[%s1 + $0x38] sm:$0xff]
  %v66 = vld [vmem:[%s1 + $0x40] sm:$0xff]
  %v67 = vld [vmem:[%s1 + $0x48] sm:$0xff]
  %v68 = vld [vmem:[%s1 + $0x50] sm:$0xff]
  %v69 = vld [vmem:[%s1 + $0x58] sm:$0xff]
  %v70 = vld [vmem:[%s1 + $0x60] sm:$0xff]
  %v71 = vld [vmem:[%s1 + $0x68] sm:$0xff]
  %v72 = vld [vmem:[%s1 + $0x70] sm:$0xff]
  %v73 = vld [vmem:[%s1 + $0x78] sm:$0xff]
  %v74 = vld [vmem:[%s2] sm:$0xff]
  %v75 = vld [vmem:[%s2 + $0x8] sm:$0xff]
  %v76 = vld [vmem:[%s2 + $0x10] sm:$0xff]
  %v77 = vld [vmem:[%s2 + $0x18] sm:$0xff]
  %v78 = vld [vmem:[%s2 + $0x20] sm:$0xff]
  %v79 = vld [vmem:[%s2 + $0x28] sm:$0xff]
  %v80 = vld [vmem:[%s2 + $0x30] sm:$0xff]
  %v81 = vld [vmem:[%s2 + $0x38] sm:$0xff]
  %v82 = vld [vmem:[%s2 + $0x40] sm:$0xff]
  %v83 = vld [vmem:[%s2 + $0x48] sm:$0xff]
  %v84 = vld [vmem:[%s2 + $0x50] sm:$0xff]
  %v85 = vld [vmem:[%s2 + $0x58] sm:$0xff]
  %v86 = vld [vmem:[%s2 + $0x60] sm:$0xff]
  %v87 = vld [vmem:[%s2 + $0x68] sm:$0xff]
  %v88 = vld [vmem:[%s2 + $0x70] sm:$0xff]
  %v89 = vld [vmem:[%s2 + $0x78] sm:$0xff]
  %v90 = vld [vmem:[%s3] sm:$0xff]
  %v91 = vld [vmem:[%s3 + $0x8] sm:$0xff]
  %v92 = vld [vmem:[%s3 + $0x10] sm:$0xff]
  %v93 = vld [vmem:[%s3 + $0x18] sm:$0xff]
  %v94 = vld [vmem:[%s3 + $0x20] sm:$0xff]
  %v95 = vld [vmem:[%s3 + $0x28] sm:$0xff]
  %v96 = vld [vmem:[%s3 + $0x30] sm:$0xff]
  %v97 = vld [vmem:[%s3 + $0x38] sm:$0xff]
  %v98 = vld [vmem:[%s3 + $0x40] sm:$0xff]
  %v99 = vld [vmem:[%s3 + $0x48] sm:$0xff]
  %v100 = vld [vmem:[%s3 + $0x50] sm:$0xff]
  %v101 = vld [vmem:[%s3 + $0x58] sm:$0xff]
  %v102 = vld [vmem:[%s3 + $0x60] sm:$0xff]
  %v103 = vld [vmem:[%s3 + $0x68] sm:$0xff]
  %v104 = vld [vmem:[%s3 + $0x70] sm:$0xff]
  %v105 = vld [vmem:[%s3 + $0x78] sm:$0xff]
  %v106 = vpack.c.bf16 %v91, %v90
  %v107 = vpack.c.bf16 %v93, %v92
  %v108 = vpack.c.bf16 %v95, %v94
  %v109 = vpack.c.bf16 %v97, %v96
  %v110 = vpack.c.bf16 %v99, %v98
  %v111 = vpack.c.bf16 %v101, %v100
  %v112 = vpack.c.bf16 %v103, %v102
  %v113 = vpack.c.bf16 %v105, %v104
  %v114 = vld [vmem:[%s4] sm:$0xf]
  %v115 = vld [vmem:[%s4 + $0x4] sm:$0xf]
  %v116 = vld [vmem:[%s4 + $0x8] sm:$0xf]
  %v117 = vld [vmem:[%s4 + $0xc] sm:$0xf]
  %v122 = vunpack.c.l.b16 %v114
  %v123 = vunpack.c.l.b16 %v115
  %v124 = vunpack.c.l.b16 %v116
  %v125 = vunpack.c.l.b16 %v117
  %v126 = vpack.c.b16 %v123, %v122
  %v127 = vpack.c.b16 %v125, %v124
  %vm130 = vcmask 261120
  %v132 = vsel %vm130, %v106, 0
  %v135 = vsel %vm130, %v107, 0
  %v138 = vsel %vm130, %v108, 0
  %v141 = vsel %vm130, %v109, 0
  %v144 = vsel %vm130, %v110, 0
  %v147 = vsel %vm130, %v111, 0
  %v150 = vsel %vm130, %v112, 0
  %v153 = vsel %vm130, %v113, 0
  %155 = vmatprep.subr.bf16.mxu0 0
  %156 = vmatpush1.bf16.msra.mxu0 0
  %157 = vmatprep.subr.bf16.mxu0 0
  %158 = vmatpush1.bf16.msra.mxu0 0
  %159 = vmatprep.subr.bf16.mxu0 0
  %160 = vmatpush1.bf16.msra.mxu0 0
  %161 = vmatprep.subr.bf16.mxu0 0
  %162 = vmatpush1.bf16.msra.mxu0 0
  %163 = vmatprep.subr.bf16.mxu0 0
  %164 = vmatpush1.bf16.msra.mxu0 0
  %165 = vmatprep.subr.bf16.mxu0 0
  %166 = vmatpush1.bf16.msra.mxu0 0
  %167 = vmatprep.subr.bf16.mxu0 0
  %168 = vmatpush1.bf16.msra.mxu0 %v127
  %169 = vmatprep.subr.bf16.mxu0 0
  %170 = vmatpush1.bf16.msra.mxu0 %v126
  %171 = vmatprep.subr.bf16.mxu0 0
  %172 = vmatpush2.bf16.msra.mxu0 0
  %173 = vmatprep.subr.bf16.mxu0 0
  %174 = vmatpush2.bf16.msra.mxu0 0
  %175 = vmatprep.subr.bf16.mxu0 0
  %176 = vmatpush2.bf16.msra.mxu0 0
  %177 = vmatprep.subr.bf16.mxu0 0
  %178 = vmatpush2.bf16.msra.mxu0 0
  %179 = vmatprep.subr.bf16.mxu0 0
  %180 = vmatpush2.bf16.msra.mxu0 0
  %181 = vmatprep.subr.bf16.mxu0 0
  %182 = vmatpush2.bf16.msra.mxu0 0
  %183 = vmatprep.subr.bf16.mxu0 0
  %184 = vmatpush2.bf16.msra.mxu0 0
  %185 = vmatprep.subr.bf16.mxu0 0
  %186 = vmatpush2.bf16.msra.mxu0 0
  %187 = vmatprep.mubr.bf16.mxu0 0
  %188 = vmatmul.mubr.bf16.gmra.mxu0 %v132
  %v189 = vpop.f32.mrf.mxu0
  %v190 = vadd.f32 0.0, %v189
  %v191 = vpop.f32.mrf.mxu0
  %v192 = vpop.f32.mrf.mxu0
  %v193 = vadd.f32 0.0, %v192
  %v194 = vpop.f32.mrf.mxu0
  %195 = vmatprep.mubr.bf16.mxu0 0
  %196 = vmatmul.mubr.bf16.gmra.mxu0 %v135
  %v197 = vpop.f32.mrf.mxu0
  %v198 = vadd.f32 0.0, %v197
  %v199 = vpop.f32.mrf.mxu0
  %v200 = vpop.f32.mrf.mxu0
  %v201 = vadd.f32 0.0, %v200
  %v202 = vpop.f32.mrf.mxu0
  %203 = vmatprep.mubr.bf16.mxu0 0
  %204 = vmatmul.mubr.bf16.gmra.mxu0 %v138
  %v205 = vpop.f32.mrf.mxu0
  %v206 = vadd.f32 0.0, %v205
  %v207 = vpop.f32.mrf.mxu0
  %v208 = vpop.f32.mrf.mxu0
  %v209 = vadd.f32 0.0, %v208
  %v210 = vpop.f32.mrf.mxu0
  %211 = vmatprep.mubr.bf16.mxu0 0
  %212 = vmatmul.mubr.bf16.gmra.mxu0 %v141
  %v213 = vpop.f32.mrf.mxu0
  %v214 = vadd.f32 0.0, %v213
  %v215 = vpop.f32.mrf.mxu0
  %v216 = vpop.f32.mrf.mxu0
  %v217 = vadd.f32 0.0, %v216
  %v218 = vpop.f32.mrf.mxu0
  %219 = vmatprep.mubr.bf16.mxu0 0
  %220 = vmatmul.mubr.bf16.gmra.mxu0 %v144
  %v221 = vpop.f32.mrf.mxu0
  %v222 = vadd.f32 0.0, %v221
  %v223 = vpop.f32.mrf.mxu0
  %v224 = vpop.f32.mrf.mxu0
  %v225 = vadd.f32 0.0, %v224
  %v226 = vpop.f32.mrf.mxu0
  %227 = vmatprep.mubr.bf16.mxu0 0
  %228 = vmatmul.mubr.bf16.gmra.mxu0 %v147
  %v229 = vpop.f32.mrf.mxu0
  %v230 = vadd.f32 0.0, %v229
  %v231 = vpop.f32.mrf.mxu0
  %v232 = vpop.f32.mrf.mxu0
  %v233 = vadd.f32 0.0, %v232
  %v234 = vpop.f32.mrf.mxu0
  %235 = vmatprep.mubr.bf16.mxu0 0
  %236 = vmatmul.mubr.bf16.gmra.mxu0 %v150
  %v237 = vpop.f32.mrf.mxu0
  %v238 = vadd.f32 0.0, %v237
  %v239 = vpop.f32.mrf.mxu0
  %v240 = vpop.f32.mrf.mxu0
  %v241 = vadd.f32 0.0, %v240
  %v242 = vpop.f32.mrf.mxu0
  %243 = vmatprep.mubr.bf16.mxu0 0
  %244 = vmatmul.mubr.bf16.gmra.mxu0 %v153
  %v245 = vpop.f32.mrf.mxu0
  %v246 = vadd.f32 0.0, %v245
  %v247 = vpop.f32.mrf.mxu0
  %v248 = vpop.f32.mrf.mxu0
  %v249 = vadd.f32 0.0, %v248
  %v250 = vpop.f32.mrf.mxu0
  %251 = vdwg.mxu0
  %253 = vset.pattern.permute.xlu0 0
  %254 = vperm.xlu0 %253, %v74
  %v255 = vpop.permute.xlu0 %254
  %258 = vset.pattern.permute.xlu0 0
  %259 = vperm.xlu0 %258, %v75
  %v260 = vpop.permute.xlu0 %259
  %263 = vset.pattern.permute.xlu0 0
  %264 = vperm.xlu0 %263, %v76
  %v265 = vpop.permute.xlu0 %264
  %268 = vset.pattern.permute.xlu0 0
  %269 = vperm.xlu0 %268, %v77
  %v270 = vpop.permute.xlu0 %269
  %273 = vset.pattern.permute.xlu0 0
  %274 = vperm.xlu0 %273, %v78
  %v275 = vpop.permute.xlu0 %274
  %278 = vset.pattern.permute.xlu0 0
  %279 = vperm.xlu0 %278, %v79
  %v280 = vpop.permute.xlu0 %279
  %283 = vset.pattern.permute.xlu0 0
  %284 = vperm.xlu0 %283, %v80
  %v285 = vpop.permute.xlu0 %284
  %288 = vset.pattern.permute.xlu0 0
  %289 = vperm.xlu0 %288, %v81
  %v290 = vpop.permute.xlu0 %289
  %293 = vset.pattern.permute.xlu0 0
  %294 = vperm.xlu0 %293, %v82
  %v295 = vpop.permute.xlu0 %294
  %298 = vset.pattern.permute.xlu0 0
  %299 = vperm.xlu0 %298, %v83
  %v300 = vpop.permute.xlu0 %299
  %303 = vset.pattern.permute.xlu0 0
  %304 = vperm.xlu0 %303, %v84
  %v305 = vpop.permute.xlu0 %304
  %308 = vset.pattern.permute.xlu0 0
  %309 = vperm.xlu0 %308, %v85
  %v310 = vpop.permute.xlu0 %309
  %313 = vset.pattern.permute.xlu0 0
  %314 = vperm.xlu0 %313, %v86
  %v315 = vpop.permute.xlu0 %314
  %318 = vset.pattern.permute.xlu0 0
  %319 = vperm.xlu0 %318, %v87
  %v320 = vpop.permute.xlu0 %319
  %323 = vset.pattern.permute.xlu0 0
  %324 = vperm.xlu0 %323, %v88
  %v325 = vpop.permute.xlu0 %324
  %328 = vset.pattern.permute.xlu0 0
  %329 = vperm.xlu0 %328, %v89
  %v330 = vpop.permute.xlu0 %329
  %v332 = vmul.f32 %v190, %v255
  %v333 = vmul.f32 %v193, %v260
  %v334 = vmul.f32 %v198, %v265
  %v335 = vmul.f32 %v201, %v270
  %v336 = vmul.f32 %v206, %v275
  %v337 = vmul.f32 %v209, %v280
  %v338 = vmul.f32 %v214, %v285
  %v339 = vmul.f32 %v217, %v290
  %v340 = vmul.f32 %v222, %v295
  %v341 = vmul.f32 %v225, %v300
  %v342 = vmul.f32 %v230, %v305
  %v343 = vmul.f32 %v233, %v310
  %v344 = vmul.f32 %v238, %v315
  %v345 = vmul.f32 %v241, %v320
  %v346 = vmul.f32 %v246, %v325
  %v347 = vmul.f32 %v249, %v330
  %v348 = vpack.c.bf16 %v333, %v332
  %v349 = vpack.c.bf16 %v335, %v334
  %v350 = vpack.c.bf16 %v337, %v336
  %v351 = vpack.c.bf16 %v339, %v338
  %v352 = vpack.c.bf16 %v341, %v340
  %v353 = vpack.c.bf16 %v343, %v342
  %v354 = vpack.c.bf16 %v345, %v344
  %v355 = vpack.c.bf16 %v347, %v346
  %v372 = vunpack.c.l.b16 %v42
  %v373 = vunpack.c.l.b16 %v43
  %v374 = vunpack.c.l.b16 %v44
  %v375 = vunpack.c.l.b16 %v45
  %v376 = vunpack.c.l.b16 %v46
  %v377 = vunpack.c.l.b16 %v47
  %v378 = vunpack.c.l.b16 %v48
  %v379 = vunpack.c.l.b16 %v49
  %v380 = vunpack.c.l.b16 %v50
  %v381 = vunpack.c.l.b16 %v51
  %v382 = vunpack.c.l.b16 %v52
  %v383 = vunpack.c.l.b16 %v53
  %v384 = vunpack.c.l.b16 %v54
  %v385 = vunpack.c.l.b16 %v55
  %v386 = vunpack.c.l.b16 %v56
  %v387 = vunpack.c.l.b16 %v57
  %v388 = vpack.c.b16 %v373, %v372
  %v389 = vpack.c.b16 %v375, %v374
  %v390 = vpack.c.b16 %v377, %v376
  %v391 = vpack.c.b16 %v379, %v378
  %v392 = vpack.c.b16 %v381, %v380
  %v393 = vpack.c.b16 %v383, %v382
  %v394 = vpack.c.b16 %v385, %v384
  %v395 = vpack.c.b16 %v387, %v386
  %404 = vmatprep.subr.bf16.mxu0 0
  %405 = vmatpush1.bf16.msra.mxu0 %v355
  %406 = vmatprep.subr.bf16.mxu0 0
  %407 = vmatpush1.bf16.msra.mxu0 %v354
  %408 = vmatprep.subr.bf16.mxu0 0
  %409 = vmatpush1.bf16.msra.mxu0 %v353
  %410 = vmatprep.subr.bf16.mxu0 0
  %411 = vmatpush1.bf16.msra.mxu0 %v352
  %412 = vmatprep.subr.bf16.mxu0 0
  %413 = vmatpush1.bf16.msra.mxu0 %v351
  %414 = vmatprep.subr.bf16.mxu0 0
  %415 = vmatpush1.bf16.msra.mxu0 %v350
  %416 = vmatprep.subr.bf16.mxu0 0
  %417 = vmatpush1.bf16.msra.mxu0 %v349
  %418 = vmatprep.subr.bf16.mxu0 0
  %419 = vmatpush1.bf16.msra.mxu0 %v348
  %420 = vmatprep.subr.bf16.mxu0 0
  %421 = vmatpush2.bf16.msra.mxu0 0
  %422 = vmatprep.subr.bf16.mxu0 0
  %423 = vmatpush2.bf16.msra.mxu0 0
  %424 = vmatprep.subr.bf16.mxu0 0
  %425 = vmatpush2.bf16.msra.mxu0 0
  %426 = vmatprep.subr.bf16.mxu0 0
  %427 = vmatpush2.bf16.msra.mxu0 0
  %428 = vmatprep.subr.bf16.mxu0 0
  %429 = vmatpush2.bf16.msra.mxu0 0
  %430 = vmatprep.subr.bf16.mxu0 0
  %431 = vmatpush2.bf16.msra.mxu0 0
  %432 = vmatprep.subr.bf16.mxu0 0
  %433 = vmatpush2.bf16.msra.mxu0 0
  %434 = vmatprep.subr.bf16.mxu0 0
  %435 = vmatpush2.bf16.msra.mxu0 0
  %436 = vmatprep.mubr.bf16.mxu0 0
  %437 = vmatmul.mubr.bf16.gmra.mxu0 %v388
  %v438 = vpop.f32.mrf.mxu0
  %v439 = vadd.f32 0.0, %v438
  %v440 = vpop.f32.mrf.mxu0
  %v441 = vpop.f32.mrf.mxu0
  %v442 = vadd.f32 0.0, %v441
  %v443 = vpop.f32.mrf.mxu0
  %444 = vmatprep.mubr.bf16.mxu0 0
  %445 = vmatmul.mubr.bf16.gmra.mxu0 %v389
  %v446 = vpop.f32.mrf.mxu0
  %v447 = vadd.f32 0.0, %v446
  %v448 = vpop.f32.mrf.mxu0
  %v449 = vpop.f32.mrf.mxu0
  %v450 = vadd.f32 0.0, %v449
  %v451 = vpop.f32.mrf.mxu0
  %452 = vmatprep.mubr.bf16.mxu0 0
  %453 = vmatmul.mubr.bf16.gmra.mxu0 %v390
  %v454 = vpop.f32.mrf.mxu0
  %v455 = vadd.f32 0.0, %v454
  %v456 = vpop.f32.mrf.mxu0
  %v457 = vpop.f32.mrf.mxu0
  %v458 = vadd.f32 0.0, %v457
  %v459 = vpop.f32.mrf.mxu0
  %460 = vmatprep.mubr.bf16.mxu0 0
  %461 = vmatmul.mubr.bf16.gmra.mxu0 %v391
  %v462 = vpop.f32.mrf.mxu0
  %v463 = vadd.f32 0.0, %v462
  %v464 = vpop.f32.mrf.mxu0
  %v465 = vpop.f32.mrf.mxu0
  %v466 = vadd.f32 0.0, %v465
  %v467 = vpop.f32.mrf.mxu0
  %468 = vmatprep.mubr.bf16.mxu0 0
  %469 = vmatmul.mubr.bf16.gmra.mxu0 %v392
  %v470 = vpop.f32.mrf.mxu0
  %v471 = vadd.f32 0.0, %v470
  %v472 = vpop.f32.mrf.mxu0
  %v473 = vpop.f32.mrf.mxu0
  %v474 = vadd.f32 0.0, %v473
  %v475 = vpop.f32.mrf.mxu0
  %476 = vmatprep.mubr.bf16.mxu0 0
  %477 = vmatmul.mubr.bf16.gmra.mxu0 %v393
  %v478 = vpop.f32.mrf.mxu0
  %v479 = vadd.f32 0.0, %v478
  %v480 = vpop.f32.mrf.mxu0
  %v481 = vpop.f32.mrf.mxu0
  %v482 = vadd.f32 0.0, %v481
  %v483 = vpop.f32.mrf.mxu0
  %484 = vmatprep.mubr.bf16.mxu0 0
  %485 = vmatmul.mubr.bf16.gmra.mxu0 %v394
  %v486 = vpop.f32.mrf.mxu0
  %v487 = vadd.f32 0.0, %v486
  %v488 = vpop.f32.mrf.mxu0
  %v489 = vpop.f32.mrf.mxu0
  %v490 = vadd.f32 0.0, %v489
  %v491 = vpop.f32.mrf.mxu0
  %492 = vmatprep.mubr.bf16.mxu0 0
  %493 = vmatmul.mubr.bf16.gmra.mxu0 %v395
  %v494 = vpop.f32.mrf.mxu0
  %v495 = vadd.f32 0.0, %v494
  %v496 = vpop.f32.mrf.mxu0
  %v497 = vpop.f32.mrf.mxu0
  %v498 = vadd.f32 0.0, %v497
  %v499 = vpop.f32.mrf.mxu0
  %500 = vdwg.mxu0
  %502 = vset.pattern.permute.xlu0 0
  %503 = vperm.xlu0 %502, %v58
  %v504 = vpop.permute.xlu0 %503
  %507 = vset.pattern.permute.xlu0 0
  %508 = vperm.xlu0 %507, %v59
  %v509 = vpop.permute.xlu0 %508
  %512 = vset.pattern.permute.xlu0 0
  %513 = vperm.xlu0 %512, %v60
  %v514 = vpop.permute.xlu0 %513
  %517 = vset.pattern.permute.xlu0 0
  %518 = vperm.xlu0 %517, %v61
  %v519 = vpop.permute.xlu0 %518
  %522 = vset.pattern.permute.xlu0 0
  %523 = vperm.xlu0 %522, %v62
  %v524 = vpop.permute.xlu0 %523
  %527 = vset.pattern.permute.xlu0 0
  %528 = vperm.xlu0 %527, %v63
  %v529 = vpop.permute.xlu0 %528
  %532 = vset.pattern.permute.xlu0 0
  %533 = vperm.xlu0 %532, %v64
  %v534 = vpop.permute.xlu0 %533
  %537 = vset.pattern.permute.xlu0 0
  %538 = vperm.xlu0 %537, %v65
  %v539 = vpop.permute.xlu0 %538
  %542 = vset.pattern.permute.xlu0 0
  %543 = vperm.xlu0 %542, %v66
  %v544 = vpop.permute.xlu0 %543
  %547 = vset.pattern.permute.xlu0 0
  %548 = vperm.xlu0 %547, %v67
  %v549 = vpop.permute.xlu0 %548
  %552 = vset.pattern.permute.xlu0 0
  %553 = vperm.xlu0 %552, %v68
  %v554 = vpop.permute.xlu0 %553
  %557 = vset.pattern.permute.xlu0 0
  %558 = vperm.xlu0 %557, %v69
  %v559 = vpop.permute.xlu0 %558
  %562 = vset.pattern.permute.xlu0 0
  %563 = vperm.xlu0 %562, %v70
  %v564 = vpop.permute.xlu0 %563
  %567 = vset.pattern.permute.xlu0 0
  %568 = vperm.xlu0 %567, %v71
  %v569 = vpop.permute.xlu0 %568
  %572 = vset.pattern.permute.xlu0 0
  %573 = vperm.xlu0 %572, %v72
  %v574 = vpop.permute.xlu0 %573
  %577 = vset.pattern.permute.xlu0 0
  %578 = vperm.xlu0 %577, %v73
  %v579 = vpop.permute.xlu0 %578
  %v581 = vmul.f32 %v439, %v504
  %v582 = vmul.f32 %v442, %v509
  %v583 = vmul.f32 %v447, %v514
  %v584 = vmul.f32 %v450, %v519
  %v585 = vmul.f32 %v455, %v524
  %v586 = vmul.f32 %v458, %v529
  %v587 = vmul.f32 %v463, %v534
  %v588 = vmul.f32 %v466, %v539
  %v589 = vmul.f32 %v471, %v544
  %v590 = vmul.f32 %v474, %v549
  %v591 = vmul.f32 %v479, %v554
  %v592 = vmul.f32 %v482, %v559
  %v593 = vmul.f32 %v487, %v564
  %v594 = vmul.f32 %v490, %v569
  %v595 = vmul.f32 %v495, %v574
  %v596 = vmul.f32 %v498, %v579
  %v597 = vld [vmem:[%s5] sm:$0x1]
  %v599 = vlaneseq
  %v600 = vshrl.u32 %v599, 7
  %v601 = vsub.s32 0, %v600
  %v602 = vrot.slane %v597, %v601
  %v604 = vadd.f32 %v581, %v602
  %v605 = vadd.f32 %v582, %v602
  %v606 = vadd.f32 %v583, %v602
  %v607 = vadd.f32 %v584, %v602
  %v608 = vadd.f32 %v585, %v602
  %v609 = vadd.f32 %v586, %v602
  %v610 = vadd.f32 %v587, %v602
  %v611 = vadd.f32 %v588, %v602
  %v612 = vadd.f32 %v589, %v602
  %v613 = vadd.f32 %v590, %v602
  %v614 = vadd.f32 %v591, %v602
  %v615 = vadd.f32 %v592, %v602
  %v616 = vadd.f32 %v593, %v602
  %v617 = vadd.f32 %v594, %v602
  %v618 = vadd.f32 %v595, %v602
  %v619 = vadd.f32 %v596, %v602
  %v620 = vmax.f32 %v604, 0.0
  %v621 = vmax.f32 %v605, 0.0
  %v622 = vmax.f32 %v606, 0.0
  %v623 = vmax.f32 %v607, 0.0
  %v624 = vmax.f32 %v608, 0.0
  %v625 = vmax.f32 %v609, 0.0
  %v626 = vmax.f32 %v610, 0.0
  %v627 = vmax.f32 %v611, 0.0
  %v628 = vmax.f32 %v612, 0.0
  %v629 = vmax.f32 %v613, 0.0
  %v630 = vmax.f32 %v614, 0.0
  %v631 = vmax.f32 %v615, 0.0
  %v632 = vmax.f32 %v616, 0.0
  %v633 = vmax.f32 %v617, 0.0
  %v634 = vmax.f32 %v618, 0.0
  %v635 = vmax.f32 %v619, 0.0
  %v636 = vpack.c.bf16 %v621, %v620
  %v637 = vpack.c.bf16 %v623, %v622
  %v638 = vpack.c.bf16 %v625, %v624
  %v639 = vpack.c.bf16 %v627, %v626
  %v640 = vpack.c.bf16 %v629, %v628
  %v641 = vpack.c.bf16 %v631, %v630
  %v642 = vpack.c.bf16 %v633, %v632
  %v643 = vpack.c.bf16 %v635, %v634
  %v644 = vld [vmem:[%s6] sm:$0xf]
  %v645 = vld [vmem:[%s6 + $0x4] sm:$0xf]
  %v646 = vld [vmem:[%s6 + $0x8] sm:$0xf]
  %v647 = vld [vmem:[%s6 + $0xc] sm:$0xf]
  %v652 = vunpack.c.l.b16 %v644
  %v653 = vunpack.c.l.b16 %v645
  %v654 = vunpack.c.l.b16 %v646
  %v655 = vunpack.c.l.b16 %v647
  %v656 = vpack.c.b16 %v653, %v652
  %v657 = vpack.c.b16 %v655, %v654
  %v661 = vsel %vm130, %v636, 0
  %v664 = vsel %vm130, %v637, 0
  %v667 = vsel %vm130, %v638, 0
  %v670 = vsel %vm130, %v639, 0
  %v673 = vsel %vm130, %v640, 0
  %v676 = vsel %vm130, %v641, 0
  %v679 = vsel %vm130, %v642, 0
  %v682 = vsel %vm130, %v643, 0
  %684 = vmatprep.subr.bf16.mxu0 0
  %685 = vmatpush1.bf16.msra.mxu0 0
  %686 = vmatprep.subr.bf16.mxu0 0
  %687 = vmatpush1.bf16.msra.mxu0 0
  %688 = vmatprep.subr.bf16.mxu0 0
  %689 = vmatpush1.bf16.msra.mxu0 0
  %690 = vmatprep.subr.bf16.mxu0 0
  %691 = vmatpush1.bf16.msra.mxu0 0
  %692 = vmatprep.subr.bf16.mxu0 0
  %693 = vmatpush1.bf16.msra.mxu0 0
  %694 = vmatprep.subr.bf16.mxu0 0
  %695 = vmatpush1.bf16.msra.mxu0 0
  %696 = vmatprep.subr.bf16.mxu0 0
  %697 = vmatpush1.bf16.msra.mxu0 %v657
  %698 = vmatprep.subr.bf16.mxu0 0
  %699 = vmatpush1.bf16.msra.mxu0 %v656
  %700 = vmatprep.subr.bf16.mxu0 0
  %701 = vmatpush2.bf16.msra.mxu0 0
  %702 = vmatprep.subr.bf16.mxu0 0
  %703 = vmatpush2.bf16.msra.mxu0 0
  %704 = vmatprep.subr.bf16.mxu0 0
  %705 = vmatpush2.bf16.msra.mxu0 0
  %706 = vmatprep.subr.bf16.mxu0 0
  %707 = vmatpush2.bf16.msra.mxu0 0
  %708 = vmatprep.subr.bf16.mxu0 0
  %709 = vmatpush2.bf16.msra.mxu0 0
  %710 = vmatprep.subr.bf16.mxu0 0
  %711 = vmatpush2.bf16.msra.mxu0 0
  %712 = vmatprep.subr.bf16.mxu0 0
  %713 = vmatpush2.bf16.msra.mxu0 0
  %714 = vmatprep.subr.bf16.mxu0 0
  %715 = vmatpush2.bf16.msra.mxu0 0
  %716 = vmatprep.mubr.bf16.mxu0 0
  %717 = vmatmul.mubr.bf16.gmra.mxu0 %v661
  %v718 = vpop.f32.mrf.mxu0
  %v719 = vadd.f32 0.0, %v718
  %v720 = vpop.f32.mrf.mxu0
  %v721 = vpop.f32.mrf.mxu0
  %v722 = vadd.f32 0.0, %v721
  %v723 = vpop.f32.mrf.mxu0
  %724 = vmatprep.mubr.bf16.mxu0 0
  %725 = vmatmul.mubr.bf16.gmra.mxu0 %v664
  %v726 = vpop.f32.mrf.mxu0
  %v727 = vadd.f32 0.0, %v726
  %v728 = vpop.f32.mrf.mxu0
  %v729 = vpop.f32.mrf.mxu0
  %v730 = vadd.f32 0.0, %v729
  %v731 = vpop.f32.mrf.mxu0
  %732 = vmatprep.mubr.bf16.mxu0 0
  %733 = vmatmul.mubr.bf16.gmra.mxu0 %v667
  %v734 = vpop.f32.mrf.mxu0
  %v735 = vadd.f32 0.0, %v734
  %v736 = vpop.f32.mrf.mxu0
  %v737 = vpop.f32.mrf.mxu0
  %v738 = vadd.f32 0.0, %v737
  %v739 = vpop.f32.mrf.mxu0
  %740 = vmatprep.mubr.bf16.mxu0 0
  %741 = vmatmul.mubr.bf16.gmra.mxu0 %v670
  %v742 = vpop.f32.mrf.mxu0
  %v743 = vadd.f32 0.0, %v742
  %v744 = vpop.f32.mrf.mxu0
  %v745 = vpop.f32.mrf.mxu0
  %v746 = vadd.f32 0.0, %v745
  %v747 = vpop.f32.mrf.mxu0
  %748 = vmatprep.mubr.bf16.mxu0 0
  %749 = vmatmul.mubr.bf16.gmra.mxu0 %v673
  %v750 = vpop.f32.mrf.mxu0
  %v751 = vadd.f32 0.0, %v750
  %v752 = vpop.f32.mrf.mxu0
  %v753 = vpop.f32.mrf.mxu0
  %v754 = vadd.f32 0.0, %v753
  %v755 = vpop.f32.mrf.mxu0
  %756 = vmatprep.mubr.bf16.mxu0 0
  %757 = vmatmul.mubr.bf16.gmra.mxu0 %v676
  %v758 = vpop.f32.mrf.mxu0
  %v759 = vadd.f32 0.0, %v758
  %v760 = vpop.f32.mrf.mxu0
  %v761 = vpop.f32.mrf.mxu0
  %v762 = vadd.f32 0.0, %v761
  %v763 = vpop.f32.mrf.mxu0
  %764 = vmatprep.mubr.bf16.mxu0 0
  %765 = vmatmul.mubr.bf16.gmra.mxu0 %v679
  %v766 = vpop.f32.mrf.mxu0
  %v767 = vadd.f32 0.0, %v766
  %v768 = vpop.f32.mrf.mxu0
  %v769 = vpop.f32.mrf.mxu0
  %v770 = vadd.f32 0.0, %v769
  %v771 = vpop.f32.mrf.mxu0
  %772 = vmatprep.mubr.bf16.mxu0 0
  %773 = vmatmul.mubr.bf16.gmra.mxu0 %v682
  %v774 = vpop.f32.mrf.mxu0
  %v775 = vadd.f32 0.0, %v774
  %v776 = vpop.f32.mrf.mxu0
  %v777 = vpop.f32.mrf.mxu0
  %v778 = vadd.f32 0.0, %v777
  %v779 = vpop.f32.mrf.mxu0
  %780 = vdwg.mxu0
  %v781 = vmul.f32 %v719, %v255
  %v782 = vmul.f32 %v722, %v260
  %v783 = vmul.f32 %v727, %v265
  %v784 = vmul.f32 %v730, %v270
  %v785 = vmul.f32 %v735, %v275
  %v786 = vmul.f32 %v738, %v280
  %v787 = vmul.f32 %v743, %v285
  %v788 = vmul.f32 %v746, %v290
  %v789 = vmul.f32 %v751, %v295
  %v790 = vmul.f32 %v754, %v300
  %v791 = vmul.f32 %v759, %v305
  %v792 = vmul.f32 %v762, %v310
  %v793 = vmul.f32 %v767, %v315
  %v794 = vmul.f32 %v770, %v320
  %v795 = vmul.f32 %v775, %v325
  %v796 = vmul.f32 %v778, %v330
  %v797 = vpack.c.bf16 %v782, %v781
  %v798 = vpack.c.bf16 %v784, %v783
  %v799 = vpack.c.bf16 %v786, %v785
  %v800 = vpack.c.bf16 %v788, %v787
  %v801 = vpack.c.bf16 %v790, %v789
  %v802 = vpack.c.bf16 %v792, %v791
  %v803 = vpack.c.bf16 %v794, %v793
  %v804 = vpack.c.bf16 %v796, %v795
  %805 = vmatprep.subr.bf16.mxu0 0
  %806 = vmatpush1.bf16.msra.mxu0 %v804
  %807 = vmatprep.subr.bf16.mxu0 0
  %808 = vmatpush1.bf16.msra.mxu0 %v803
  %809 = vmatprep.subr.bf16.mxu0 0
  %810 = vmatpush1.bf16.msra.mxu0 %v802
  %811 = vmatprep.subr.bf16.mxu0 0
  %812 = vmatpush1.bf16.msra.mxu0 %v801
  %813 = vmatprep.subr.bf16.mxu0 0
  %814 = vmatpush1.bf16.msra.mxu0 %v800
  %815 = vmatprep.subr.bf16.mxu0 0
  %816 = vmatpush1.bf16.msra.mxu0 %v799
  %817 = vmatprep.subr.bf16.mxu0 0
  %818 = vmatpush1.bf16.msra.mxu0 %v798
  %819 = vmatprep.subr.bf16.mxu0 0
  %820 = vmatpush1.bf16.msra.mxu0 %v797
  %821 = vmatprep.subr.bf16.mxu0 0
  %822 = vmatpush2.bf16.msra.mxu0 0
  %823 = vmatprep.subr.bf16.mxu0 0
  %824 = vmatpush2.bf16.msra.mxu0 0
  %825 = vmatprep.subr.bf16.mxu0 0
  %826 = vmatpush2.bf16.msra.mxu0 0
  %827 = vmatprep.subr.bf16.mxu0 0
  %828 = vmatpush2.bf16.msra.mxu0 0
  %829 = vmatprep.subr.bf16.mxu0 0
  %830 = vmatpush2.bf16.msra.mxu0 0
  %831 = vmatprep.subr.bf16.mxu0 0
  %832 = vmatpush2.bf16.msra.mxu0 0
  %833 = vmatprep.subr.bf16.mxu0 0
  %834 = vmatpush2.bf16.msra.mxu0 0
  %835 = vmatprep.subr.bf16.mxu0 0
  %836 = vmatpush2.bf16.msra.mxu0 0
  %837 = vmatprep.mubr.bf16.mxu0 0
  %838 = vmatmul.mubr.bf16.gmra.mxu0 %v388
  %v839 = vpop.f32.mrf.mxu0
  %v840 = vadd.f32 0.0, %v839
  %v841 = vpop.f32.mrf.mxu0
  %v842 = vpop.f32.mrf.mxu0
  %v843 = vadd.f32 0.0, %v842
  %v844 = vpop.f32.mrf.mxu0
  %845 = vmatprep.mubr.bf16.mxu0 0
  %846 = vmatmul.mubr.bf16.gmra.mxu0 %v389
  %v847 = vpop.f32.mrf.mxu0
  %v848 = vadd.f32 0.0, %v847
  %v849 = vpop.f32.mrf.mxu0
  %v850 = vpop.f32.mrf.mxu0
  %v851 = vadd.f32 0.0, %v850
  %v852 = vpop.f32.mrf.mxu0
  %853 = vmatprep.mubr.bf16.mxu0 0
  %854 = vmatmul.mubr.bf16.gmra.mxu0 %v390
  %v855 = vpop.f32.mrf.mxu0
  %v856 = vadd.f32 0.0, %v855
  %v857 = vpop.f32.mrf.mxu0
  %v858 = vpop.f32.mrf.mxu0
  %v859 = vadd.f32 0.0, %v858
  %v860 = vpop.f32.mrf.mxu0
  %861 = vmatprep.mubr.bf16.mxu0 0
  %862 = vmatmul.mubr.bf16.gmra.mxu0 %v391
  %v863 = vpop.f32.mrf.mxu0
  %v864 = vadd.f32 0.0, %v863
  %v865 = vpop.f32.mrf.mxu0
  %v866 = vpop.f32.mrf.mxu0
  %v867 = vadd.f32 0.0, %v866
  %v868 = vpop.f32.mrf.mxu0
  %869 = vmatprep.mubr.bf16.mxu0 0
  %870 = vmatmul.mubr.bf16.gmra.mxu0 %v392
  %v871 = vpop.f32.mrf.mxu0
  %v872 = vadd.f32 0.0, %v871
  %v873 = vpop.f32.mrf.mxu0
  %v874 = vpop.f32.mrf.mxu0
  %v875 = vadd.f32 0.0, %v874
  %v876 = vpop.f32.mrf.mxu0
  %877 = vmatprep.mubr.bf16.mxu0 0
  %878 = vmatmul.mubr.bf16.gmra.mxu0 %v393
  %v879 = vpop.f32.mrf.mxu0
  %v880 = vadd.f32 0.0, %v879
  %v881 = vpop.f32.mrf.mxu0
  %v882 = vpop.f32.mrf.mxu0
  %v883 = vadd.f32 0.0, %v882
  %v884 = vpop.f32.mrf.mxu0
  %885 = vmatprep.mubr.bf16.mxu0 0
  %886 = vmatmul.mubr.bf16.gmra.mxu0 %v394
  %v887 = vpop.f32.mrf.mxu0
  %v888 = vadd.f32 0.0, %v887
  %v889 = vpop.f32.mrf.mxu0
  %v890 = vpop.f32.mrf.mxu0
  %v891 = vadd.f32 0.0, %v890
  %v892 = vpop.f32.mrf.mxu0
  %893 = vmatprep.mubr.bf16.mxu0 0
  %894 = vmatmul.mubr.bf16.gmra.mxu0 %v395
  %v895 = vpop.f32.mrf.mxu0
  %v896 = vadd.f32 0.0, %v895
  %v897 = vpop.f32.mrf.mxu0
  %v898 = vpop.f32.mrf.mxu0
  %v899 = vadd.f32 0.0, %v898
  %v900 = vpop.f32.mrf.mxu0
  %901 = vdwg.mxu0
  %v902 = vmul.f32 %v840, %v504
  %v903 = vmul.f32 %v843, %v509
  %v904 = vmul.f32 %v848, %v514
  %v905 = vmul.f32 %v851, %v519
  %v906 = vmul.f32 %v856, %v524
  %v907 = vmul.f32 %v859, %v529
  %v908 = vmul.f32 %v864, %v534
  %v909 = vmul.f32 %v867, %v539
  %v910 = vmul.f32 %v872, %v544
  %v911 = vmul.f32 %v875, %v549
  %v912 = vmul.f32 %v880, %v554
  %v913 = vmul.f32 %v883, %v559
  %v914 = vmul.f32 %v888, %v564
  %v915 = vmul.f32 %v891, %v569
  %v916 = vmul.f32 %v896, %v574
  %v917 = vmul.f32 %v899, %v579
  %v918 = vld [vmem:[%s7] sm:$0x1]
  %v920 = vlaneseq
  %v921 = vshrl.u32 %v920, 7
  %v922 = vsub.s32 0, %v921
  %v923 = vrot.slane %v918, %v922
  %v925 = vadd.f32 %v902, %v923
  %v926 = vadd.f32 %v903, %v923
  %v927 = vadd.f32 %v904, %v923
  %v928 = vadd.f32 %v905, %v923
  %v929 = vadd.f32 %v906, %v923
  %v930 = vadd.f32 %v907, %v923
  %v931 = vadd.f32 %v908, %v923
  %v932 = vadd.f32 %v909, %v923
  %v933 = vadd.f32 %v910, %v923
  %v934 = vadd.f32 %v911, %v923
  %v935 = vadd.f32 %v912, %v923
  %v936 = vadd.f32 %v913, %v923
  %v937 = vadd.f32 %v914, %v923
  %v938 = vadd.f32 %v915, %v923
  %v939 = vadd.f32 %v916, %v923
  %v940 = vadd.f32 %v917, %v923
  %v941 = vmax.f32 %v925, 0.0
  %v942 = vmax.f32 %v926, 0.0
  %v943 = vmax.f32 %v927, 0.0
  %v944 = vmax.f32 %v928, 0.0
  %v945 = vmax.f32 %v929, 0.0
  %v946 = vmax.f32 %v930, 0.0
  %v947 = vmax.f32 %v931, 0.0
  %v948 = vmax.f32 %v932, 0.0
  %v949 = vmax.f32 %v933, 0.0
  %v950 = vmax.f32 %v934, 0.0
  %v951 = vmax.f32 %v935, 0.0
  %v952 = vmax.f32 %v936, 0.0
  %v953 = vmax.f32 %v937, 0.0
  %v954 = vmax.f32 %v938, 0.0
  %v955 = vmax.f32 %v939, 0.0
  %v956 = vmax.f32 %v940, 0.0
  %v957 = vpack.c.bf16 %v942, %v941
  %v958 = vpack.c.bf16 %v944, %v943
  %v959 = vpack.c.bf16 %v946, %v945
  %v960 = vpack.c.bf16 %v948, %v947
  %v961 = vpack.c.bf16 %v950, %v949
  %v962 = vpack.c.bf16 %v952, %v951
  %v963 = vpack.c.bf16 %v954, %v953
  %v964 = vpack.c.bf16 %v956, %v955
  %v965 = vld [vmem:[%s8] sm:$0xf]
  %v966 = vld [vmem:[%s8 + $0x4] sm:$0xf]
  %v967 = vld [vmem:[%s8 + $0x8] sm:$0xf]
  %v968 = vld [vmem:[%s8 + $0xc] sm:$0xf]
  %v973 = vunpack.c.l.b16 %v965
  %v974 = vunpack.c.l.b16 %v966
  %v975 = vunpack.c.l.b16 %v967
  %v976 = vunpack.c.l.b16 %v968
  %v977 = vpack.c.b16 %v974, %v973
  %v978 = vpack.c.b16 %v976, %v975
  %v982 = vsel %vm130, %v957, 0
  %v985 = vsel %vm130, %v958, 0
  %v988 = vsel %vm130, %v959, 0
  %v991 = vsel %vm130, %v960, 0
  %v994 = vsel %vm130, %v961, 0
  %v997 = vsel %vm130, %v962, 0
  %v1000 = vsel %vm130, %v963, 0
  %v1003 = vsel %vm130, %v964, 0
  %1005 = vmatprep.subr.bf16.mxu0 0
  %1006 = vmatpush1.bf16.msra.mxu0 0
  %1007 = vmatprep.subr.bf16.mxu0 0
  %1008 = vmatpush1.bf16.msra.mxu0 0
  %1009 = vmatprep.subr.bf16.mxu0 0
  %1010 = vmatpush1.bf16.msra.mxu0 0
  %1011 = vmatprep.subr.bf16.mxu0 0
  %1012 = vmatpush1.bf16.msra.mxu0 0
  %1013 = vmatprep.subr.bf16.mxu0 0
  %1014 = vmatpush1.bf16.msra.mxu0 0
  %1015 = vmatprep.subr.bf16.mxu0 0
  %1016 = vmatpush1.bf16.msra.mxu0 0
  %1017 = vmatprep.subr.bf16.mxu0 0
  %1018 = vmatpush1.bf16.msra.mxu0 %v978
  %1019 = vmatprep.subr.bf16.mxu0 0
  %1020 = vmatpush1.bf16.msra.mxu0 %v977
  %1021 = vmatprep.subr.bf16.mxu0 0
  %1022 = vmatpush2.bf16.msra.mxu0 0
  %1023 = vmatprep.subr.bf16.mxu0 0
  %1024 = vmatpush2.bf16.msra.mxu0 0
  %1025 = vmatprep.subr.bf16.mxu0 0
  %1026 = vmatpush2.bf16.msra.mxu0 0
  %1027 = vmatprep.subr.bf16.mxu0 0
  %1028 = vmatpush2.bf16.msra.mxu0 0
  %1029 = vmatprep.subr.bf16.mxu0 0
  %1030 = vmatpush2.bf16.msra.mxu0 0
  %1031 = vmatprep.subr.bf16.mxu0 0
  %1032 = vmatpush2.bf16.msra.mxu0 0
  %1033 = vmatprep.subr.bf16.mxu0 0
  %1034 = vmatpush2.bf16.msra.mxu0 0
  %1035 = vmatprep.subr.bf16.mxu0 0
  %1036 = vmatpush2.bf16.msra.mxu0 0
  %1037 = vmatprep.mubr.bf16.mxu0 0
  %1038 = vmatmul.mubr.bf16.gmra.mxu0 %v982
  %v1039 = vpop.f32.mrf.mxu0
  %v1040 = vadd.f32 0.0, %v1039
  %v1041 = vpop.f32.mrf.mxu0
  %v1042 = vpop.f32.mrf.mxu0
  %v1043 = vadd.f32 0.0, %v1042
  %v1044 = vpop.f32.mrf.mxu0
  %1045 = vmatprep.mubr.bf16.mxu0 0
  %1046 = vmatmul.mubr.bf16.gmra.mxu0 %v985
  %v1047 = vpop.f32.mrf.mxu0
  %v1048 = vadd.f32 0.0, %v1047
  %v1049 = vpop.f32.mrf.mxu0
  %v1050 = vpop.f32.mrf.mxu0
  %v1051 = vadd.f32 0.0, %v1050
  %v1052 = vpop.f32.mrf.mxu0
  %1053 = vmatprep.mubr.bf16.mxu0 0
  %1054 = vmatmul.mubr.bf16.gmra.mxu0 %v988
  %v1055 = vpop.f32.mrf.mxu0
  %v1056 = vadd.f32 0.0, %v1055
  %v1057 = vpop.f32.mrf.mxu0
  %v1058 = vpop.f32.mrf.mxu0
  %v1059 = vadd.f32 0.0, %v1058
  %v1060 = vpop.f32.mrf.mxu0
  %1061 = vmatprep.mubr.bf16.mxu0 0
  %1062 = vmatmul.mubr.bf16.gmra.mxu0 %v991
  %v1063 = vpop.f32.mrf.mxu0
  %v1064 = vadd.f32 0.0, %v1063
  %v1065 = vpop.f32.mrf.mxu0
  %v1066 = vpop.f32.mrf.mxu0
  %v1067 = vadd.f32 0.0, %v1066
  %v1068 = vpop.f32.mrf.mxu0
  %1069 = vmatprep.mubr.bf16.mxu0 0
  %1070 = vmatmul.mubr.bf16.gmra.mxu0 %v994
  %v1071 = vpop.f32.mrf.mxu0
  %v1072 = vadd.f32 0.0, %v1071
  %v1073 = vpop.f32.mrf.mxu0
  %v1074 = vpop.f32.mrf.mxu0
  %v1075 = vadd.f32 0.0, %v1074
  %v1076 = vpop.f32.mrf.mxu0
  %1077 = vmatprep.mubr.bf16.mxu0 0
  %1078 = vmatmul.mubr.bf16.gmra.mxu0 %v997
  %v1079 = vpop.f32.mrf.mxu0
  %v1080 = vadd.f32 0.0, %v1079
  %v1081 = vpop.f32.mrf.mxu0
  %v1082 = vpop.f32.mrf.mxu0
  %v1083 = vadd.f32 0.0, %v1082
  %v1084 = vpop.f32.mrf.mxu0
  %1085 = vmatprep.mubr.bf16.mxu0 0
  %1086 = vmatmul.mubr.bf16.gmra.mxu0 %v1000
  %v1087 = vpop.f32.mrf.mxu0
  %v1088 = vadd.f32 0.0, %v1087
  %v1089 = vpop.f32.mrf.mxu0
  %v1090 = vpop.f32.mrf.mxu0
  %v1091 = vadd.f32 0.0, %v1090
  %v1092 = vpop.f32.mrf.mxu0
  %1093 = vmatprep.mubr.bf16.mxu0 0
  %1094 = vmatmul.mubr.bf16.gmra.mxu0 %v1003
  %v1095 = vpop.f32.mrf.mxu0
  %v1096 = vadd.f32 0.0, %v1095
  %v1097 = vpop.f32.mrf.mxu0
  %v1098 = vpop.f32.mrf.mxu0
  %v1099 = vadd.f32 0.0, %v1098
  %v1100 = vpop.f32.mrf.mxu0
  %1101 = vdwg.mxu0
  %v1102 = vmul.f32 %v1040, %v255
  %v1103 = vmul.f32 %v1043, %v260
  %v1104 = vmul.f32 %v1048, %v265
  %v1105 = vmul.f32 %v1051, %v270
  %v1106 = vmul.f32 %v1056, %v275
  %v1107 = vmul.f32 %v1059, %v280
  %v1108 = vmul.f32 %v1064, %v285
  %v1109 = vmul.f32 %v1067, %v290
  %v1110 = vmul.f32 %v1072, %v295
  %v1111 = vmul.f32 %v1075, %v300
  %v1112 = vmul.f32 %v1080, %v305
  %v1113 = vmul.f32 %v1083, %v310
  %v1114 = vmul.f32 %v1088, %v315
  %v1115 = vmul.f32 %v1091, %v320
  %v1116 = vmul.f32 %v1096, %v325
  %v1117 = vmul.f32 %v1099, %v330
  %v1118 = vpack.c.bf16 %v1103, %v1102
  %v1119 = vpack.c.bf16 %v1105, %v1104
  %v1120 = vpack.c.bf16 %v1107, %v1106
  %v1121 = vpack.c.bf16 %v1109, %v1108
  %v1122 = vpack.c.bf16 %v1111, %v1110
  %v1123 = vpack.c.bf16 %v1113, %v1112
  %v1124 = vpack.c.bf16 %v1115, %v1114
  %v1125 = vpack.c.bf16 %v1117, %v1116
  %1126 = vmatprep.subr.bf16.mxu0 0
  %1127 = vmatpush1.bf16.msra.mxu0 %v1125
  %1128 = vmatprep.subr.bf16.mxu0 0
  %1129 = vmatpush1.bf16.msra.mxu0 %v1124
  %1130 = vmatprep.subr.bf16.mxu0 0
  %1131 = vmatpush1.bf16.msra.mxu0 %v1123
  %1132 = vmatprep.subr.bf16.mxu0 0
  %1133 = vmatpush1.bf16.msra.mxu0 %v1122
  %1134 = vmatprep.subr.bf16.mxu0 0
  %1135 = vmatpush1.bf16.msra.mxu0 %v1121
  %1136 = vmatprep.subr.bf16.mxu0 0
  %1137 = vmatpush1.bf16.msra.mxu0 %v1120
  %1138 = vmatprep.subr.bf16.mxu0 0
  %1139 = vmatpush1.bf16.msra.mxu0 %v1119
  %1140 = vmatprep.subr.bf16.mxu0 0
  %1141 = vmatpush1.bf16.msra.mxu0 %v1118
  %1142 = vmatprep.subr.bf16.mxu0 0
  %1143 = vmatpush2.bf16.msra.mxu0 0
  %1144 = vmatprep.subr.bf16.mxu0 0
  %1145 = vmatpush2.bf16.msra.mxu0 0
  %1146 = vmatprep.subr.bf16.mxu0 0
  %1147 = vmatpush2.bf16.msra.mxu0 0
  %1148 = vmatprep.subr.bf16.mxu0 0
  %1149 = vmatpush2.bf16.msra.mxu0 0
  %1150 = vmatprep.subr.bf16.mxu0 0
  %1151 = vmatpush2.bf16.msra.mxu0 0
  %1152 = vmatprep.subr.bf16.mxu0 0
  %1153 = vmatpush2.bf16.msra.mxu0 0
  %1154 = vmatprep.subr.bf16.mxu0 0
  %1155 = vmatpush2.bf16.msra.mxu0 0
  %1156 = vmatprep.subr.bf16.mxu0 0
  %1157 = vmatpush2.bf16.msra.mxu0 0
  %1158 = vmatprep.mubr.bf16.mxu0 0
  %1159 = vmatmul.mubr.bf16.gmra.mxu0 %v388
  %v1160 = vpop.f32.mrf.mxu0
  %v1161 = vadd.f32 0.0, %v1160
  %v1162 = vpop.f32.mrf.mxu0
  %v1163 = vpop.f32.mrf.mxu0
  %v1164 = vadd.f32 0.0, %v1163
  %v1165 = vpop.f32.mrf.mxu0
  %1166 = vmatprep.mubr.bf16.mxu0 0
  %1167 = vmatmul.mubr.bf16.gmra.mxu0 %v389
  %v1168 = vpop.f32.mrf.mxu0
  %v1169 = vadd.f32 0.0, %v1168
  %v1170 = vpop.f32.mrf.mxu0
  %v1171 = vpop.f32.mrf.mxu0
  %v1172 = vadd.f32 0.0, %v1171
  %v1173 = vpop.f32.mrf.mxu0
  %1174 = vmatprep.mubr.bf16.mxu0 0
  %1175 = vmatmul.mubr.bf16.gmra.mxu0 %v390
  %v1176 = vpop.f32.mrf.mxu0
  %v1177 = vadd.f32 0.0, %v1176
  %v1178 = vpop.f32.mrf.mxu0
  %v1179 = vpop.f32.mrf.mxu0
  %v1180 = vadd.f32 0.0, %v1179
  %v1181 = vpop.f32.mrf.mxu0
  %1182 = vmatprep.mubr.bf16.mxu0 0
  %1183 = vmatmul.mubr.bf16.gmra.mxu0 %v391
  %v1184 = vpop.f32.mrf.mxu0
  %v1185 = vadd.f32 0.0, %v1184
  %v1186 = vpop.f32.mrf.mxu0
  %v1187 = vpop.f32.mrf.mxu0
  %v1188 = vadd.f32 0.0, %v1187
  %v1189 = vpop.f32.mrf.mxu0
  %1190 = vmatprep.mubr.bf16.mxu0 0
  %1191 = vmatmul.mubr.bf16.gmra.mxu0 %v392
  %v1192 = vpop.f32.mrf.mxu0
  %v1193 = vadd.f32 0.0, %v1192
  %v1194 = vpop.f32.mrf.mxu0
  %v1195 = vpop.f32.mrf.mxu0
  %v1196 = vadd.f32 0.0, %v1195
  %v1197 = vpop.f32.mrf.mxu0
  %1198 = vmatprep.mubr.bf16.mxu0 0
  %1199 = vmatmul.mubr.bf16.gmra.mxu0 %v393
  %v1200 = vpop.f32.mrf.mxu0
  %v1201 = vadd.f32 0.0, %v1200
  %v1202 = vpop.f32.mrf.mxu0
  %v1203 = vpop.f32.mrf.mxu0
  %v1204 = vadd.f32 0.0, %v1203
  %v1205 = vpop.f32.mrf.mxu0
  %1206 = vmatprep.mubr.bf16.mxu0 0
  %1207 = vmatmul.mubr.bf16.gmra.mxu0 %v394
  %v1208 = vpop.f32.mrf.mxu0
  %v1209 = vadd.f32 0.0, %v1208
  %v1210 = vpop.f32.mrf.mxu0
  %v1211 = vpop.f32.mrf.mxu0
  %v1212 = vadd.f32 0.0, %v1211
  %v1213 = vpop.f32.mrf.mxu0
  %1214 = vmatprep.mubr.bf16.mxu0 0
  %1215 = vmatmul.mubr.bf16.gmra.mxu0 %v395
  %v1216 = vpop.f32.mrf.mxu0
  %v1217 = vadd.f32 0.0, %v1216
  %v1218 = vpop.f32.mrf.mxu0
  %v1219 = vpop.f32.mrf.mxu0
  %v1220 = vadd.f32 0.0, %v1219
  %v1221 = vpop.f32.mrf.mxu0
  %1222 = vdwg.mxu0
  %v1223 = vmul.f32 %v1161, %v504
  %v1224 = vmul.f32 %v1164, %v509
  %v1225 = vmul.f32 %v1169, %v514
  %v1226 = vmul.f32 %v1172, %v519
  %v1227 = vmul.f32 %v1177, %v524
  %v1228 = vmul.f32 %v1180, %v529
  %v1229 = vmul.f32 %v1185, %v534
  %v1230 = vmul.f32 %v1188, %v539
  %v1231 = vmul.f32 %v1193, %v544
  %v1232 = vmul.f32 %v1196, %v549
  %v1233 = vmul.f32 %v1201, %v554
  %v1234 = vmul.f32 %v1204, %v559
  %v1235 = vmul.f32 %v1209, %v564
  %v1236 = vmul.f32 %v1212, %v569
  %v1237 = vmul.f32 %v1217, %v574
  %v1238 = vmul.f32 %v1220, %v579
  %v1239 = vld [vmem:[%s9] sm:$0x1]
  %v1241 = vlaneseq
  %v1242 = vshrl.u32 %v1241, 7
  %v1243 = vsub.s32 0, %v1242
  %v1244 = vrot.slane %v1239, %v1243
  %v1246 = vadd.f32 %v1223, %v1244
  %v1247 = vadd.f32 %v1224, %v1244
  %v1248 = vadd.f32 %v1225, %v1244
  %v1249 = vadd.f32 %v1226, %v1244
  %v1250 = vadd.f32 %v1227, %v1244
  %v1251 = vadd.f32 %v1228, %v1244
  %v1252 = vadd.f32 %v1229, %v1244
  %v1253 = vadd.f32 %v1230, %v1244
  %v1254 = vadd.f32 %v1231, %v1244
  %v1255 = vadd.f32 %v1232, %v1244
  %v1256 = vadd.f32 %v1233, %v1244
  %v1257 = vadd.f32 %v1234, %v1244
  %v1258 = vadd.f32 %v1235, %v1244
  %v1259 = vadd.f32 %v1236, %v1244
  %v1260 = vadd.f32 %v1237, %v1244
  %v1261 = vadd.f32 %v1238, %v1244
  %v1262 = vmax.f32 %v1246, 0.0
  %v1263 = vmax.f32 %v1247, 0.0
  %v1264 = vmax.f32 %v1248, 0.0
  %v1265 = vmax.f32 %v1249, 0.0
  %v1266 = vmax.f32 %v1250, 0.0
  %v1267 = vmax.f32 %v1251, 0.0
  %v1268 = vmax.f32 %v1252, 0.0
  %v1269 = vmax.f32 %v1253, 0.0
  %v1270 = vmax.f32 %v1254, 0.0
  %v1271 = vmax.f32 %v1255, 0.0
  %v1272 = vmax.f32 %v1256, 0.0
  %v1273 = vmax.f32 %v1257, 0.0
  %v1274 = vmax.f32 %v1258, 0.0
  %v1275 = vmax.f32 %v1259, 0.0
  %v1276 = vmax.f32 %v1260, 0.0
  %v1277 = vmax.f32 %v1261, 0.0
  %v1278 = vpack.c.bf16 %v1263, %v1262
  %v1279 = vpack.c.bf16 %v1265, %v1264
  %v1280 = vpack.c.bf16 %v1267, %v1266
  %v1281 = vpack.c.bf16 %v1269, %v1268
  %v1282 = vpack.c.bf16 %v1271, %v1270
  %v1283 = vpack.c.bf16 %v1273, %v1272
  %v1284 = vpack.c.bf16 %v1275, %v1274
  %v1285 = vpack.c.bf16 %v1277, %v1276
  %v1286 = vld [vmem:[%s10] sm:$0xf]
  %v1287 = vld [vmem:[%s10 + $0x4] sm:$0xf]
  %v1288 = vld [vmem:[%s10 + $0x8] sm:$0xf]
  %v1289 = vld [vmem:[%s10 + $0xc] sm:$0xf]
  %v1294 = vunpack.c.l.b16 %v1286
  %v1295 = vunpack.c.l.b16 %v1287
  %v1296 = vunpack.c.l.b16 %v1288
  %v1297 = vunpack.c.l.b16 %v1289
  %v1298 = vpack.c.b16 %v1295, %v1294
  %v1299 = vpack.c.b16 %v1297, %v1296
  %v1303 = vsel %vm130, %v1278, 0
  %v1306 = vsel %vm130, %v1279, 0
  %v1309 = vsel %vm130, %v1280, 0
  %v1312 = vsel %vm130, %v1281, 0
  %v1315 = vsel %vm130, %v1282, 0
  %v1318 = vsel %vm130, %v1283, 0
  %v1321 = vsel %vm130, %v1284, 0
  %v1324 = vsel %vm130, %v1285, 0
  %1326 = vmatprep.subr.bf16.mxu0 0
  %1327 = vmatpush1.bf16.msra.mxu0 0
  %1328 = vmatprep.subr.bf16.mxu0 0
  %1329 = vmatpush1.bf16.msra.mxu0 0
  %1330 = vmatprep.subr.bf16.mxu0 0
  %1331 = vmatpush1.bf16.msra.mxu0 0
  %1332 = vmatprep.subr.bf16.mxu0 0
  %1333 = vmatpush1.bf16.msra.mxu0 0
  %1334 = vmatprep.subr.bf16.mxu0 0
  %1335 = vmatpush1.bf16.msra.mxu0 0
  %1336 = vmatprep.subr.bf16.mxu0 0
  %1337 = vmatpush1.bf16.msra.mxu0 0
  %1338 = vmatprep.subr.bf16.mxu0 0
  %1339 = vmatpush1.bf16.msra.mxu0 %v1299
  %1340 = vmatprep.subr.bf16.mxu0 0
  %1341 = vmatpush1.bf16.msra.mxu0 %v1298
  %1342 = vmatprep.subr.bf16.mxu0 0
  %1343 = vmatpush2.bf16.msra.mxu0 0
  %1344 = vmatprep.subr.bf16.mxu0 0
  %1345 = vmatpush2.bf16.msra.mxu0 0
  %1346 = vmatprep.subr.bf16.mxu0 0
  %1347 = vmatpush2.bf16.msra.mxu0 0
  %1348 = vmatprep.subr.bf16.mxu0 0
  %1349 = vmatpush2.bf16.msra.mxu0 0
  %1350 = vmatprep.subr.bf16.mxu0 0
  %1351 = vmatpush2.bf16.msra.mxu0 0
  %1352 = vmatprep.subr.bf16.mxu0 0
  %1353 = vmatpush2.bf16.msra.mxu0 0
  %1354 = vmatprep.subr.bf16.mxu0 0
  %1355 = vmatpush2.bf16.msra.mxu0 0
  %1356 = vmatprep.subr.bf16.mxu0 0
  %1357 = vmatpush2.bf16.msra.mxu0 0
  %1358 = vmatprep.mubr.bf16.mxu0 0
  %1359 = vmatmul.mubr.bf16.gmra.mxu0 %v1303
  %v1360 = vpop.f32.mrf.mxu0
  %v1361 = vadd.f32 0.0, %v1360
  %v1362 = vpop.f32.mrf.mxu0
  %v1363 = vpop.f32.mrf.mxu0
  %v1364 = vadd.f32 0.0, %v1363
  %v1365 = vpop.f32.mrf.mxu0
  %1366 = vmatprep.mubr.bf16.mxu0 0
  %1367 = vmatmul.mubr.bf16.gmra.mxu0 %v1306
  %v1368 = vpop.f32.mrf.mxu0
  %v1369 = vadd.f32 0.0, %v1368
  %v1370 = vpop.f32.mrf.mxu0
  %v1371 = vpop.f32.mrf.mxu0
  %v1372 = vadd.f32 0.0, %v1371
  %v1373 = vpop.f32.mrf.mxu0
  %1374 = vmatprep.mubr.bf16.mxu0 0
  %1375 = vmatmul.mubr.bf16.gmra.mxu0 %v1309
  %v1376 = vpop.f32.mrf.mxu0
  %v1377 = vadd.f32 0.0, %v1376
  %v1378 = vpop.f32.mrf.mxu0
  %v1379 = vpop.f32.mrf.mxu0
  %v1380 = vadd.f32 0.0, %v1379
  %v1381 = vpop.f32.mrf.mxu0
  %1382 = vmatprep.mubr.bf16.mxu0 0
  %1383 = vmatmul.mubr.bf16.gmra.mxu0 %v1312
  %v1384 = vpop.f32.mrf.mxu0
  %v1385 = vadd.f32 0.0, %v1384
  %v1386 = vpop.f32.mrf.mxu0
  %v1387 = vpop.f32.mrf.mxu0
  %v1388 = vadd.f32 0.0, %v1387
  %v1389 = vpop.f32.mrf.mxu0
  %1390 = vmatprep.mubr.bf16.mxu0 0
  %1391 = vmatmul.mubr.bf16.gmra.mxu0 %v1315
  %v1392 = vpop.f32.mrf.mxu0
  %v1393 = vadd.f32 0.0, %v1392
  %v1394 = vpop.f32.mrf.mxu0
  %v1395 = vpop.f32.mrf.mxu0
  %v1396 = vadd.f32 0.0, %v1395
  %v1397 = vpop.f32.mrf.mxu0
  %1398 = vmatprep.mubr.bf16.mxu0 0
  %1399 = vmatmul.mubr.bf16.gmra.mxu0 %v1318
  %v1400 = vpop.f32.mrf.mxu0
  %v1401 = vadd.f32 0.0, %v1400
  %v1402 = vpop.f32.mrf.mxu0
  %v1403 = vpop.f32.mrf.mxu0
  %v1404 = vadd.f32 0.0, %v1403
  %v1405 = vpop.f32.mrf.mxu0
  %1406 = vmatprep.mubr.bf16.mxu0 0
  %1407 = vmatmul.mubr.bf16.gmra.mxu0 %v1321
  %v1408 = vpop.f32.mrf.mxu0
  %v1409 = vadd.f32 0.0, %v1408
  %v1410 = vpop.f32.mrf.mxu0
  %v1411 = vpop.f32.mrf.mxu0
  %v1412 = vadd.f32 0.0, %v1411
  %v1413 = vpop.f32.mrf.mxu0
  %1414 = vmatprep.mubr.bf16.mxu0 0
  %1415 = vmatmul.mubr.bf16.gmra.mxu0 %v1324
  %v1416 = vpop.f32.mrf.mxu0
  %v1417 = vadd.f32 0.0, %v1416
  %v1418 = vpop.f32.mrf.mxu0
  %v1419 = vpop.f32.mrf.mxu0
  %v1420 = vadd.f32 0.0, %v1419
  %v1421 = vpop.f32.mrf.mxu0
  %1422 = vdwg.mxu0
  %v1423 = vmul.f32 %v1361, %v255
  %v1424 = vmul.f32 %v1364, %v260
  %v1425 = vmul.f32 %v1369, %v265
  %v1426 = vmul.f32 %v1372, %v270
  %v1427 = vmul.f32 %v1377, %v275
  %v1428 = vmul.f32 %v1380, %v280
  %v1429 = vmul.f32 %v1385, %v285
  %v1430 = vmul.f32 %v1388, %v290
  %v1431 = vmul.f32 %v1393, %v295
  %v1432 = vmul.f32 %v1396, %v300
  %v1433 = vmul.f32 %v1401, %v305
  %v1434 = vmul.f32 %v1404, %v310
  %v1435 = vmul.f32 %v1409, %v315
  %v1436 = vmul.f32 %v1412, %v320
  %v1437 = vmul.f32 %v1417, %v325
  %v1438 = vmul.f32 %v1420, %v330
  %v1439 = vpack.c.bf16 %v1424, %v1423
  %v1440 = vpack.c.bf16 %v1426, %v1425
  %v1441 = vpack.c.bf16 %v1428, %v1427
  %v1442 = vpack.c.bf16 %v1430, %v1429
  %v1443 = vpack.c.bf16 %v1432, %v1431
  %v1444 = vpack.c.bf16 %v1434, %v1433
  %v1445 = vpack.c.bf16 %v1436, %v1435
  %v1446 = vpack.c.bf16 %v1438, %v1437
  %1447 = vmatprep.subr.bf16.mxu0 0
  %1448 = vmatpush1.bf16.msra.mxu0 %v1446
  %1449 = vmatprep.subr.bf16.mxu0 0
  %1450 = vmatpush1.bf16.msra.mxu0 %v1445
  %1451 = vmatprep.subr.bf16.mxu0 0
  %1452 = vmatpush1.bf16.msra.mxu0 %v1444
  %1453 = vmatprep.subr.bf16.mxu0 0
  %1454 = vmatpush1.bf16.msra.mxu0 %v1443
  %1455 = vmatprep.subr.bf16.mxu0 0
  %1456 = vmatpush1.bf16.msra.mxu0 %v1442
  %1457 = vmatprep.subr.bf16.mxu0 0
  %1458 = vmatpush1.bf16.msra.mxu0 %v1441
  %1459 = vmatprep.subr.bf16.mxu0 0
  %1460 = vmatpush1.bf16.msra.mxu0 %v1440
  %1461 = vmatprep.subr.bf16.mxu0 0
  %1462 = vmatpush1.bf16.msra.mxu0 %v1439
  %1463 = vmatprep.subr.bf16.mxu0 0
  %1464 = vmatpush2.bf16.msra.mxu0 0
  %1465 = vmatprep.subr.bf16.mxu0 0
  %1466 = vmatpush2.bf16.msra.mxu0 0
  %1467 = vmatprep.subr.bf16.mxu0 0
  %1468 = vmatpush2.bf16.msra.mxu0 0
  %1469 = vmatprep.subr.bf16.mxu0 0
  %1470 = vmatpush2.bf16.msra.mxu0 0
  %1471 = vmatprep.subr.bf16.mxu0 0
  %1472 = vmatpush2.bf16.msra.mxu0 0
  %1473 = vmatprep.subr.bf16.mxu0 0
  %1474 = vmatpush2.bf16.msra.mxu0 0
  %1475 = vmatprep.subr.bf16.mxu0 0
  %1476 = vmatpush2.bf16.msra.mxu0 0
  %1477 = vmatprep.subr.bf16.mxu0 0
  %1478 = vmatpush2.bf16.msra.mxu0 0
  %1479 = vmatprep.mubr.bf16.mxu0 0
  %1480 = vmatmul.mubr.bf16.gmra.mxu0 %v388
  %v1481 = vpop.f32.mrf.mxu0
  %v1482 = vadd.f32 0.0, %v1481
  %v1483 = vpop.f32.mrf.mxu0
  %v1484 = vpop.f32.mrf.mxu0
  %v1485 = vadd.f32 0.0, %v1484
  %v1486 = vpop.f32.mrf.mxu0
  %1487 = vmatprep.mubr.bf16.mxu0 0
  %1488 = vmatmul.mubr.bf16.gmra.mxu0 %v389
  %v1489 = vpop.f32.mrf.mxu0
  %v1490 = vadd.f32 0.0, %v1489
  %v1491 = vpop.f32.mrf.mxu0
  %v1492 = vpop.f32.mrf.mxu0
  %v1493 = vadd.f32 0.0, %v1492
  %v1494 = vpop.f32.mrf.mxu0
  %1495 = vmatprep.mubr.bf16.mxu0 0
  %1496 = vmatmul.mubr.bf16.gmra.mxu0 %v390
  %v1497 = vpop.f32.mrf.mxu0
  %v1498 = vadd.f32 0.0, %v1497
  %v1499 = vpop.f32.mrf.mxu0
  %v1500 = vpop.f32.mrf.mxu0
  %v1501 = vadd.f32 0.0, %v1500
  %v1502 = vpop.f32.mrf.mxu0
  %1503 = vmatprep.mubr.bf16.mxu0 0
  %1504 = vmatmul.mubr.bf16.gmra.mxu0 %v391
  %v1505 = vpop.f32.mrf.mxu0
  %v1506 = vadd.f32 0.0, %v1505
  %v1507 = vpop.f32.mrf.mxu0
  %v1508 = vpop.f32.mrf.mxu0
  %v1509 = vadd.f32 0.0, %v1508
  %v1510 = vpop.f32.mrf.mxu0
  %1511 = vmatprep.mubr.bf16.mxu0 0
  %1512 = vmatmul.mubr.bf16.gmra.mxu0 %v392
  %v1513 = vpop.f32.mrf.mxu0
  %v1514 = vadd.f32 0.0, %v1513
  %v1515 = vpop.f32.mrf.mxu0
  %v1516 = vpop.f32.mrf.mxu0
  %v1517 = vadd.f32 0.0, %v1516
  %v1518 = vpop.f32.mrf.mxu0
  %1519 = vmatprep.mubr.bf16.mxu0 0
  %1520 = vmatmul.mubr.bf16.gmra.mxu0 %v393
  %v1521 = vpop.f32.mrf.mxu0
  %v1522 = vadd.f32 0.0, %v1521
  %v1523 = vpop.f32.mrf.mxu0
  %v1524 = vpop.f32.mrf.mxu0
  %v1525 = vadd.f32 0.0, %v1524
  %v1526 = vpop.f32.mrf.mxu0
  %1527 = vmatprep.mubr.bf16.mxu0 0
  %1528 = vmatmul.mubr.bf16.gmra.mxu0 %v394
  %v1529 = vpop.f32.mrf.mxu0
  %v1530 = vadd.f32 0.0, %v1529
  %v1531 = vpop.f32.mrf.mxu0
  %v1532 = vpop.f32.mrf.mxu0
  %v1533 = vadd.f32 0.0, %v1532
  %v1534 = vpop.f32.mrf.mxu0
  %1535 = vmatprep.mubr.bf16.mxu0 0
  %1536 = vmatmul.mubr.bf16.gmra.mxu0 %v395
  %v1537 = vpop.f32.mrf.mxu0
  %v1538 = vadd.f32 0.0, %v1537
  %v1539 = vpop.f32.mrf.mxu0
  %v1540 = vpop.f32.mrf.mxu0
  %v1541 = vadd.f32 0.0, %v1540
  %v1542 = vpop.f32.mrf.mxu0
  %1543 = vdwg.mxu0
  %v1544 = vmul.f32 %v1482, %v504
  %v1545 = vmul.f32 %v1485, %v509
  %v1546 = vmul.f32 %v1490, %v514
  %v1547 = vmul.f32 %v1493, %v519
  %v1548 = vmul.f32 %v1498, %v524
  %v1549 = vmul.f32 %v1501, %v529
  %v1550 = vmul.f32 %v1506, %v534
  %v1551 = vmul.f32 %v1509, %v539
  %v1552 = vmul.f32 %v1514, %v544
  %v1553 = vmul.f32 %v1517, %v549
  %v1554 = vmul.f32 %v1522, %v554
  %v1555 = vmul.f32 %v1525, %v559
  %v1556 = vmul.f32 %v1530, %v564
  %v1557 = vmul.f32 %v1533, %v569
  %v1558 = vmul.f32 %v1538, %v574
  %v1559 = vmul.f32 %v1541, %v579
  %v1560 = vld [vmem:[%s11] sm:$0x1]
  %v1562 = vlaneseq
  %v1563 = vshrl.u32 %v1562, 7
  %v1564 = vsub.s32 0, %v1563
  %v1565 = vrot.slane %v1560, %v1564
  %v1567 = vadd.f32 %v1544, %v1565
  %v1568 = vadd.f32 %v1545, %v1565
  %v1569 = vadd.f32 %v1546, %v1565
  %v1570 = vadd.f32 %v1547, %v1565
  %v1571 = vadd.f32 %v1548, %v1565
  %v1572 = vadd.f32 %v1549, %v1565
  %v1573 = vadd.f32 %v1550, %v1565
  %v1574 = vadd.f32 %v1551, %v1565
  %v1575 = vadd.f32 %v1552, %v1565
  %v1576 = vadd.f32 %v1553, %v1565
  %v1577 = vadd.f32 %v1554, %v1565
  %v1578 = vadd.f32 %v1555, %v1565
  %v1579 = vadd.f32 %v1556, %v1565
  %v1580 = vadd.f32 %v1557, %v1565
  %v1581 = vadd.f32 %v1558, %v1565
  %v1582 = vadd.f32 %v1559, %v1565
  %vm1583 = vcmask 130048
  %1584 = vst.msk [vmem:[%s12] sm:$0xff] %vm1583, %v1567
  %1585 = vst.msk [vmem:[%s12 + $0x8] sm:$0xff] %vm1583, %v1568
  %1586 = vst.msk [vmem:[%s12 + $0x10] sm:$0xff] %vm1583, %v1569
  %1587 = vst.msk [vmem:[%s12 + $0x18] sm:$0xff] %vm1583, %v1570
  %1588 = vst.msk [vmem:[%s12 + $0x20] sm:$0xff] %vm1583, %v1571
  %1589 = vst.msk [vmem:[%s12 + $0x28] sm:$0xff] %vm1583, %v1572
  %1590 = vst.msk [vmem:[%s12 + $0x30] sm:$0xff] %vm1583, %v1573
  %1591 = vst.msk [vmem:[%s12 + $0x38] sm:$0xff] %vm1583, %v1574
  %1592 = vst.msk [vmem:[%s12 + $0x40] sm:$0xff] %vm1583, %v1575
  %1593 = vst.msk [vmem:[%s12 + $0x48] sm:$0xff] %vm1583, %v1576
  %1594 = vst.msk [vmem:[%s12 + $0x50] sm:$0xff] %vm1583, %v1577
  %1595 = vst.msk [vmem:[%s12 + $0x58] sm:$0xff] %vm1583, %v1578
  %1596 = vst.msk [vmem:[%s12 + $0x60] sm:$0xff] %vm1583, %v1579
  %1597 = vst.msk [vmem:[%s12 + $0x68] sm:$0xff] %vm1583, %v1580
  %1598 = vst.msk [vmem:[%s12 + $0x70] sm:$0xff] %vm1583, %v1581
  %1599 = vst.msk [vmem:[%s12 + $0x78] sm:$0xff] %vm1583, %v1582
  // Predicated region
  $region50: #{gcn_forward.1} parent=0 // pred_check
    _
  $region51: #{gcn_forward.1} parent=0 // pred_check_branch
    %1601 = sbr.rel (0) target = $region53
  $region52: #{gcn_forward.1} parent=0 // pred_region
    _
  $region53: #{gcn_forward.1} parent=0 // pred_fallthru
    _
  // Predicated region
  $region54: #{gcn_forward.1} parent=0 // pred_check
    _
  $region55: #{gcn_forward.1} parent=0 // pred_check_branch
    %1603 = sbr.rel (0) target = $region57
  $region56: #{gcn_forward.1} parent=0 // pred_region
    _
  $region57: #{gcn_forward.1} parent=0 // pred_fallthru
    _

</llo_original>
